<compile_context>
chip_gen: v7x
topology: tpu7x:2x2x1
jax: 0.10.0
libtpu: 0.0.40
codegen_flags: <defaults>
</compile_context>

<pallas_src>
import jax
import jax.numpy as jnp
from jax.experimental import pallas as pl
from jax.experimental.pallas import tpu as pltpu

BN_EPS = 1e-3  # nn.BatchNorm2d(noutput, eps=0.001)


# ---------------------------------------------------------------------------------------------
# Kernels
# ---------------------------------------------------------------------------------------------
def _conv_tile(a_ref, b_ref, w_ref):
    """Sub-pixel stride-2 transposed conv on one row-tile, as a single MXU matmul.

    a_ref: (N, TH, W, Cin)   input rows [t*TH, t*TH+TH)
    b_ref: (N, 1,  W, Cin)   halo row t*TH+TH (clamped DMA; zeroed here on the last tile)
    w_ref: (4*Cin, 4*Cout)   taps packed per shifted view [x(i,j), x(i,j+1), x(i+1,j), x(i+1,j+1)],
                             output parities packed along the last dim [ee, eo, oe, oo]
    returns y: (N*TH*W, 4*Cout) float32
    """
    n, th, wd, cin = a_ref.shape

    lo = a_ref[...]                                               # x[i, j]     (N, TH, W, Cin)
    halo = b_ref[...]
    is_last = pl.program_id(0) == pl.num_programs(0) - 1
    halo = jnp.where(is_last, jnp.zeros_like(halo), halo)         # bottom halo row is zero at i=H
    hi = jnp.concatenate([lo[:, 1:, :, :], halo], axis=1)         # x[i+1, j]  (row-major-dim copy)

    zcol = jnp.zeros((n, th, 1, cin), lo.dtype)                   # right halo column is zero
    lo1 = jnp.concatenate([lo[:, :, 1:, :], zcol], axis=2)        # x[i, j+1]
    hi1 = jnp.concatenate([hi[:, :, 1:, :], zcol], axis=2)        # x[i+1, j+1]

    # Fused LHS: channel-axis (lane) packing of the 4 shifted views -> one matmul with K=4*Cin.
    lhs = jnp.concatenate([lo, lo1, hi, hi1], axis=3).reshape(n * th * wd, 4 * cin)
    return jnp.dot(lhs, w_ref[...], preferred_element_type=jnp.float32)


def stats_kernel(a_ref, b_ref, w_ref, sum_ref, sq_ref):
    """Pass 1: per-tile partial sum / sum-of-squares of the conv output (one row per grid step)."""
    y = _conv_tile(a_ref, b_ref, w_ref)                           # (rows, 4*Cout) f32
    sum_ref[...] = jnp.sum(y, axis=0, keepdims=True).reshape(sum_ref.shape)
    sq_ref[...] = jnp.sum(y * y, axis=0, keepdims=True).reshape(sq_ref.shape)


def apply_kernel(a_ref, b_ref, w_ref, scale_ref, shift_ref, o_ref):
    """Pass 2: recompute conv, apply fused BN scale/shift + ReLU, store lane-dense packed slab."""
    y = _conv_tile(a_ref, b_ref, w_ref)                           # (rows, 4*Cout) f32
    y = jnp.maximum(y * scale_ref[...] + shift_ref[...], 0.0)
    o_ref[...] = y.reshape(o_ref.shape).astype(o_ref.dtype)


# ---------------------------------------------------------------------------------------------
# Sizing helpers
# ---------------------------------------------------------------------------------------------
def _default_vmem_limit_bytes():
    """96 MiB on 128-MiB parts (v5e/v6e), conservative 32 MiB on v7x / unknown."""
    try:
        cap = int(pltpu.get_tpu_info().vmem_capacity_bytes)
    except Exception:
        cap = 0
    if cap >= 96 * 2**20:
        return 96 * 2**20
    return 32 * 2**20


def _pick_h_tile(n, h, w, cin, cout, in_bytes, out_bytes, budget_bytes):
    """Largest TH dividing H whose estimated per-tile VMEM footprint fits the byte budget.

    The footprint models lane padding of the minor dim (ceil(c/128)*128), sublane padding of the
    second-minor dim, x2 double-buffering of pipelined operands, and the in-kernel temporaries
    that _conv_tile materializes (shifted views, fused LHS, f32 conv output).
    """
    lane = lambda c: -(-c // 128) * 128
    sub = lambda r: -(-r // 8) * 8

    def footprint(th):
        a_t = n * th * sub(w) * lane(cin) * in_bytes              # input tile
        b_t = n * sub(w) * lane(cin) * in_bytes                   # halo row
        w_t = sub(4 * cin) * lane(4 * cout) * in_bytes            # packed weight
        lhs_t = n * th * sub(w) * lane(4 * cin) * in_bytes        # fused LHS
        y_t = n * sub(th * w) * lane(4 * cout) * 4                # f32 conv output (and y*y)
        o_t = n * sub(th * w) * lane(4 * cout) * out_bytes        # pass-2 output block
        return 2 * (a_t + b_t + w_t + o_t) + 3 * a_t + lhs_t + 2 * y_t

    valid = [th for th in range(1, h + 1)
             if h % th == 0 and ((th * w) % 8 == 0 or th == h)]
    fits = [th for th in valid if footprint(th) <= budget_bytes]
    # Fall back to the smallest legal tile when nothing fits (e.g. prime H with W % 8 != 0 forces
    # TH == H); that is the minimum-footprint choice under the block-shape constraints.
    return max(fits) if fits else min(valid)


# ---------------------------------------------------------------------------------------------
# Wrapper
# ---------------------------------------------------------------------------------------------
def upsampler_block(x, weight, bias, gamma, beta, *,
                    compute_dtype=jnp.float32, out_dtype=None, h_tile=None,
                    vmem_budget_bytes=None, vmem_limit_bytes=None,
                    input_format="NCHW", output_format="NCHW"):
    """ConvTranspose2d(3x3, s2, p1, op1) + BatchNorm2d(batch stats, eps=1e-3) + ReLU.

    weight: (Cin, Cout, 3, 3) PyTorch ConvTranspose2d layout.
    input_format:  "NCHW" (PyTorch) or "NHWC" (skips the prologue transpose).
    output_format: "NCHW" (PyTorch), "NHWC", or "PACKED" ((N, H*W, 4*Cout), parity order
                   [ee, eo, oe, oo]; zero epilogue HBM round trips).
    For production use compute_dtype=jnp.bfloat16 (MXU accumulation and BN stats stay f32).
    """
    # Conv bias is exactly cancelled by the training-mode BatchNorm mean subtraction.
    # TODO(synk): running_mean/running_var buffer updates (training side effect) are not modeled;
    # they would need the bias, but the forward output does not depend on them.
    del bias

    if out_dtype is None:
        out_dtype = compute_dtype
    if input_format == "NCHW":
        N, Cin, H, W = x.shape
        x_nhwc = jnp.transpose(x, (0, 2, 3, 1))
    elif input_format == "NHWC":
        N, H, W, Cin = x.shape
        x_nhwc = x
    else:
        raise ValueError(input_format)
    x_nhwc = x_nhwc.astype(compute_dtype)
    Cout = weight.shape[1]

    if vmem_limit_bytes is None:
        vmem_limit_bytes = _default_vmem_limit_bytes()
    if vmem_budget_bytes is None:
        vmem_budget_bytes = (3 * vmem_limit_bytes) // 4

    in_b = jnp.dtype(compute_dtype).itemsize
    out_b = jnp.dtype(out_dtype).itemsize
    if h_tile is None:
        TH = _pick_h_tile(N, H, W, Cin, Cout, in_b, out_b, vmem_budget_bytes)
    else:
        assert H % h_tile == 0, (H, h_tile)
        TH = h_tile
    GT = H // TH

    # Pack the 3x3 taps into one (4*Cin, 4*Cout) weight: row blocks per shifted view
    # [x(i,j), x(i,j+1), x(i+1,j), x(i+1,j+1)], column groups per output parity [ee, eo, oe, oo].
    w = jnp.transpose(weight, (2, 3, 0, 1)).astype(compute_dtype)   # (3, 3, Cin, Cout)
    z = jnp.zeros((Cin, Cout), compute_dtype)
    wpack = jnp.concatenate([
        jnp.concatenate([w[1, 1], w[1, 2], w[2, 1], w[2, 2]], axis=1),  # taps hit by x[i, j]
        jnp.concatenate([z,       w[1, 0], z,       w[2, 0]], axis=1),  # taps hit by x[i, j+1]
        jnp.concatenate([z,       z,       w[0, 1], w[0, 2]], axis=1),  # taps hit by x[i+1, j]
        jnp.concatenate([z,       z,       z,       w[0, 0]], axis=1),  # taps hit by x[i+1, j+1]
    ], axis=0)                                                          # (4*Cin, 4*Cout)

    a_spec = pl.BlockSpec((N, TH, W, Cin), lambda t: (0, t, 0, 0))
    # Bottom halo row; index clamped so the last tile's DMA stays in range (zeroed in-kernel).
    b_spec = pl.BlockSpec((N, 1, W, Cin),
                          lambda t: (0, jnp.minimum((t + 1) * TH, H - 1), 0, 0))
    w_spec = pl.BlockSpec((4 * Cin, 4 * Cout), lambda t: (0, 0))
    stat_spec = pl.BlockSpec((1, 1, 4 * Cout), lambda t: (t, 0, 0))
    vec_spec = pl.BlockSpec((1, 4 * Cout), lambda t: (0, 0))

    # ---- Pass 1: per-tile partial batch statistics ("parallel" axis -> megacore on v7x). ----
    ysum, ysq = pl.pallas_call(
        stats_kernel,
        grid=(GT,),
        in_specs=[a_spec, b_spec, w_spec],
        out_specs=[stat_spec, stat_spec],
        out_shape=(jax.ShapeDtypeStruct((GT, 1, 4 * Cout), jnp.float32),
                   jax.ShapeDtypeStruct((GT, 1, 4 * Cout), jnp.float32)),
        compiler_params=pltpu.CompilerParams(
            dimension_semantics=("parallel",),
            vmem_limit_bytes=vmem_limit_bytes),
    )(x_nhwc, x_nhwc, wpack)

    # Tiny reduction over tiles + parity groups in XLA, then fused BN scale/shift (f32).
    cnt = jnp.float32(N * (2 * H) * (2 * W))
    mean = ysum.reshape(GT * 4, Cout).sum(axis=0) / cnt
    var = jnp.maximum(ysq.reshape(GT * 4, Cout).sum(axis=0) / cnt - mean * mean, 0.0)
    scale_c = gamma.astype(jnp.float32) * jax.lax.rsqrt(var + BN_EPS)
    shift_c = beta.astype(jnp.float32) - mean * scale_c
    scale_p = jnp.tile(scale_c, 4).reshape(1, 4 * Cout)
    shift_p = jnp.tile(shift_c, 4).reshape(1, 4 * Cout)

    # ---- Pass 2: conv + BN apply + ReLU, lane-dense packed (rows, 4*Cout) output. ----
    out_packed = pl.pallas_call(
        apply_kernel,
        grid=(GT,),
        in_specs=[a_spec, b_spec, w_spec, vec_spec, vec_spec],
        out_specs=pl.BlockSpec((N, TH * W, 4 * Cout), lambda t: (0, t, 0)),
        out_shape=jax.ShapeDtypeStruct((N, H * W, 4 * Cout), out_dtype),
        compiler_params=pltpu.CompilerParams(
            dimension_semantics=("parallel",),
            vmem_limit_bytes=vmem_limit_bytes),
    )(x_nhwc, x_nhwc, wpack, scale_p, shift_p)

    if output_format == "PACKED":
        return out_packed
    y = out_packed.reshape(N, H, W, 2, 2, Cout)                     # (n, i, j, ph, pw, c)
    if output_format == "NHWC":
        return jnp.transpose(y, (0, 1, 3, 2, 4, 5)).reshape(N, 2 * H, 2 * W, Cout)
    if output_format == "NCHW":
        return jnp.transpose(y, (0, 5, 1, 3, 2, 4)).reshape(N, Cout, 2 * H, 2 * W)
    raise ValueError(output_format)


# ---------------------------------------------------------------------------------------------
# Pure-JAX reference (mirrors the PyTorch forward) and self-check
# ---------------------------------------------------------------------------------------------
def reference_upsampler(x_nchw, weight, bias, gamma, beta):
    w_flip = jnp.flip(weight, axis=(2, 3))               # (Cin, Cout, 3, 3)
    w_oihw = jnp.transpose(w_flip, (1, 0, 2, 3))         # (Cout, Cin, 3, 3)
    y = jax.lax.conv_general_dilated(
        x_nchw, w_oihw, window_strides=(1, 1),
        padding=[(1, 2), (1, 2)], lhs_dilation=(2, 2),
        dimension_numbers=("NCHW", "OIHW", "NCHW"),
        precision=jax.lax.Precision.HIGHEST)
    y = y + bias[None, :, None, None]
    mean = jnp.mean(y, axis=(0, 2, 3), keepdims=True)
    var = jnp.mean((y - mean) ** 2, axis=(0, 2, 3), keepdims=True)
    y = (y - mean) * jax.lax.rsqrt(var + BN_EPS)
    y = y * gamma[None, :, None, None] + beta[None, :, None, None]
    return jnp.maximum(y, 0.0)


if __name__ == "__main__":
    # Small shapes consistent with the module: N=2, ninput=4, noutput=8, H=W=16 -> output 32x32.
    N, CIN, COUT, H, W = 2, 4, 8, 16, 16

    key = jax.random.PRNGKey(0)
    k_x, k_w, k_b, k_g, k_bb = jax.random.split(key, 5)

    x = jax.random.normal(k_x, (N, CIN, H, W), dtype=jnp.float32)
    weight = 0.1 * jax.random.normal(k_w, (CIN, COUT, 3, 3), dtype=jnp.float32)  # ConvTranspose2d
    bias = 0.1 * jax.random.normal(k_b, (COUT,), dtype=jnp.float32)
    gamma = 1.0 + 0.1 * jax.random.normal(k_g, (COUT,), dtype=jnp.float32)
    beta = 0.1 * jax.random.normal(k_bb, (COUT,), dtype=jnp.float32)

    ref = jax.block_until_ready(reference_upsampler(x, weight, bias, gamma, beta))

    # f32 run with a forced 2-step grid so the tiled/pipelined multi-tile path is exercised.
    out = jax.block_until_ready(upsampler_block(x, weight, bias, gamma, beta, h_tile=8))
    assert out.shape == (N, COUT, 2 * H, 2 * W), out.shape
    assert jnp.allclose(out, ref, atol=2e-3, rtol=2e-3), float(jnp.max(jnp.abs(out - ref)))

    # bf16 HBM I/O (production config from the perf review); f32 MXU accumulation + f32 stats.
    out_bf16 = jax.block_until_ready(
        upsampler_block(x, weight, bias, gamma, beta, compute_dtype=jnp.bfloat16))
    assert out_bf16.dtype == jnp.bfloat16
    err = float(jnp.max(jnp.abs(out_bf16.astype(jnp.float32) - ref)))
    assert err < 1.5e-1, err

    print("KERNEL_OK")
</pallas_src>

<mosaic_0001>
module attributes {stable_mosaic.version = 11 : i64} {
  func.func @stats_kernel(%arg0: i32, %arg1: memref<2x8x16x4xf32, #tpu.memory_space<vmem>>, %arg2: memref<2x1x16x4xf32, #tpu.memory_space<vmem>>, %arg3: memref<16x32xf32, #tpu.memory_space<vmem>>, %arg4: memref<1x1x32xf32, #tpu.memory_space<vmem>>, %arg5: memref<1x1x32xf32, #tpu.memory_space<vmem>>) attributes {dimension_semantics = [#tpu.dimension_semantics<parallel>], iteration_bounds = array<i64: 2>, scalar_prefetch = 0 : i64, scratch_operands = 0 : i64, tpu.core_type = #tpu.core_type<tc>, window_params = [{transform_indices = @transform_0, window_bounds = array<i64: 2, 8, 16, 4>}, {transform_indices = @transform_1, window_bounds = array<i64: 2, 1, 16, 4>}, {pipeline_mode = #tpu.pipeline_mode<synchronous>, transform_indices = @transform_2, window_bounds = array<i64: 16, 32>}, {transform_indices = @transform_3, window_bounds = array<i64: 1, 1, 32>}, {transform_indices = @transform_4, window_bounds = array<i64: 1, 1, 32>}]} {
    %c0 = arith.constant 0 : index
    %c0_0 = arith.constant 0 : index
    %c0_1 = arith.constant 0 : index
    %c0_2 = arith.constant 0 : index
    %0 = vector.load %arg1[%c0, %c0_0, %c0_1, %c0_2] : memref<2x8x16x4xf32, #tpu.memory_space<vmem>>, vector<2x8x16x4xf32>
    %c0_3 = arith.constant 0 : index
    %c0_4 = arith.constant 0 : index
    %c0_5 = arith.constant 0 : index
    %c0_6 = arith.constant 0 : index
    %1 = vector.load %arg2[%c0_3, %c0_4, %c0_5, %c0_6] : memref<2x1x16x4xf32, #tpu.memory_space<vmem>>, vector<2x1x16x4xf32>
    %c1_i32 = arith.constant 1 : i32
    %2 = arith.cmpi eq, %arg0, %c1_i32 : i32
    %cst = arith.constant 0.000000e+00 : f32
    %3 = vector.broadcast %cst : f32 to vector<2x1x16x4xf32>
    %4 = arith.select %2, %3, %1 : vector<2x1x16x4xf32>
    %5 = vector.extract_strided_slice %0 {offsets = [0, 1, 0, 0], sizes = [2, 7, 16, 4], strides = [1, 1, 1, 1]} : vector<2x8x16x4xf32> to vector<2x7x16x4xf32>
    %6 = tpu.concatenate %5, %4 in 1 : vector<2x7x16x4xf32>, vector<2x1x16x4xf32> -> vector<2x8x16x4xf32>
    %cst_7 = arith.constant 0.000000e+00 : f32
    %7 = vector.broadcast %cst_7 : f32 to vector<2x8x1x4xf32>
    %8 = vector.extract_strided_slice %0 {offsets = [0, 0, 1, 0], sizes = [2, 8, 15, 4], strides = [1, 1, 1, 1]} : vector<2x8x16x4xf32> to vector<2x8x15x4xf32>
    %9 = tpu.concatenate %8, %7 in 2 : vector<2x8x15x4xf32>, vector<2x8x1x4xf32> -> vector<2x8x16x4xf32>
    %10 = vector.extract_strided_slice %6 {offsets = [0, 0, 1, 0], sizes = [2, 8, 15, 4], strides = [1, 1, 1, 1]} : vector<2x8x16x4xf32> to vector<2x8x15x4xf32>
    %11 = tpu.concatenate %10, %7 in 2 : vector<2x8x15x4xf32>, vector<2x8x1x4xf32> -> vector<2x8x16x4xf32>
    %12 = tpu.concatenate %0, %9, %6, %11 in 3 : vector<2x8x16x4xf32>, vector<2x8x16x4xf32>, vector<2x8x16x4xf32>, vector<2x8x16x4xf32> -> vector<2x8x16x16xf32>
    %13 = vector.shape_cast %12 : vector<2x8x16x16xf32> to vector<256x16xf32>
    %c0_8 = arith.constant 0 : index
    %c0_9 = arith.constant 0 : index
    %14 = vector.load %arg3[%c0_8, %c0_9] : memref<16x32xf32, #tpu.memory_space<vmem>>, vector<16x32xf32>
    %cst_10 = arith.constant dense<0.000000e+00> : vector<256x32xf32>
    %15 = tpu.matmul %13, %14, %cst_10 {dimension_numbers = #tpu.dot_dimension_numbers<[1], [0], [0], [1], [0, 0, 1, 1], [], []>} : vector<256x16xf32>, vector<16x32xf32>, vector<256x32xf32> -> vector<256x32xf32>
    %cst_11 = arith.constant dense<0.000000e+00> : vector<32xf32>
    %16 = vector.multi_reduction <add>, %15, %cst_11 [0] : vector<256x32xf32> to vector<32xf32>
    %17 = vector.shape_cast %16 : vector<32xf32> to vector<1x32xf32>
    %18 = vector.shape_cast %17 : vector<1x32xf32> to vector<1x1x32xf32>
    %c0_12 = arith.constant 0 : index
    %c0_13 = arith.constant 0 : index
    %c0_14 = arith.constant 0 : index
    %19 = vector.load %arg4[%c0_12, %c0_13, %c0_14] : memref<1x1x32xf32, #tpu.memory_space<vmem>>, vector<1x1x32xf32>
    tpu.vector_store %arg4[%c0_12, %c0_13, %c0_14], %18 {strides = array<i32>} : memref<1x1x32xf32, #tpu.memory_space<vmem>>, vector<1x1x32xf32>,
    %20 = arith.mulf %15, %15 : vector<256x32xf32>
    %cst_15 = arith.constant dense<0.000000e+00> : vector<32xf32>
    %21 = vector.multi_reduction <add>, %20, %cst_15 [0] : vector<256x32xf32> to vector<32xf32>
    %22 = vector.shape_cast %21 : vector<32xf32> to vector<1x32xf32>
    %23 = vector.shape_cast %22 : vector<1x32xf32> to vector<1x1x32xf32>
    %c0_16 = arith.constant 0 : index
    %c0_17 = arith.constant 0 : index
    %c0_18 = arith.constant 0 : index
    %24 = vector.load %arg5[%c0_16, %c0_17, %c0_18] : memref<1x1x32xf32, #tpu.memory_space<vmem>>, vector<1x1x32xf32>
    tpu.vector_store %arg5[%c0_16, %c0_17, %c0_18], %23 {strides = array<i32>} : memref<1x1x32xf32, #tpu.memory_space<vmem>>, vector<1x1x32xf32>,
    return
  }
  func.func @transform_0(%arg0: i32) -> (i32, i32, i32, i32) {
    %c0_i32 = arith.constant 0 : i32
    %c0_i32_0 = arith.constant 0 : i32
    %c0_i32_1 = arith.constant 0 : i32
    %c0_i32_2 = arith.constant 0 : i32
    return %c0_i32, %arg0, %c0_i32_0, %c0_i32_1 : i32, i32, i32, i32
  }
  func.func @transform_1(%arg0: i32) -> (i32, i32, i32, i32) {
    %c1_i32 = arith.constant 1 : i32
    %0 = arith.addi %arg0, %c1_i32 : i32
    %c8_i32 = arith.constant 8 : i32
    %1 = arith.muli %0, %c8_i32 : i32
    %c15_i32 = arith.constant 15 : i32
    %2 = arith.minsi %1, %c15_i32 : i32
    %c0_i32 = arith.constant 0 : i32
    %c0_i32_0 = arith.constant 0 : i32
    %c0_i32_1 = arith.constant 0 : i32
    %c0_i32_2 = arith.constant 0 : i32
    return %c0_i32, %2, %c0_i32_0, %c0_i32_1 : i32, i32, i32, i32
  }
  func.func @transform_2(%arg0: i32) -> (i32, i32) {
    %c0_i32 = arith.constant 0 : i32
    %c0_i32_0 = arith.constant 0 : i32
    %c0_i32_1 = arith.constant 0 : i32
    return %c0_i32, %c0_i32_0 : i32, i32
  }
  func.func @transform_3(%arg0: i32) -> (i32, i32, i32) {
    %c0_i32 = arith.constant 0 : i32
    %c0_i32_0 = arith.constant 0 : i32
    %c0_i32_1 = arith.constant 0 : i32
    return %arg0, %c0_i32, %c0_i32_0 : i32, i32, i32
  }
  func.func @transform_4(%arg0: i32) -> (i32, i32, i32) {
    %c0_i32 = arith.constant 0 : i32
    %c0_i32_0 = arith.constant 0 : i32
    %c0_i32_1 = arith.constant 0 : i32
    return %arg0, %c0_i32, %c0_i32_0 : i32, i32, i32
  }
}

</mosaic_0001>

<llo_original>
// kernel: tpu_custom_call.1
$region0: #{tpu_custom_call.1}
  #allocation0 [shape = 'u32[]', space=smem, size = 0x4, offset = 0x4, fixed_abs, tag = 'smem constant byte address 0x4 - core index']
  #allocation1 [shape = 'u32[144,128]{1,0:T(1,128)}', space=vmem, size = 0x12000, scoped, tag = 'internal scratch']
  %s0 = inlined_call_operand.vmem [shape: f32[2,16,16,4], index: 0, kind: input, shape index: {}]
  %s1 = inlined_call_operand.vmem [shape: f32[2,16,16,4], index: 1, kind: input, shape index: {}]
  %s2 = inlined_call_operand.vmem [shape: f32[16,32], index: 2, kind: input, shape index: {}]
  %s3 = inlined_call_operand.hbm [shape: f32[2,1,32], index: 3, kind: output, shape index: {0}]
  %s4 = inlined_call_operand.hbm [shape: f32[2,1,32], index: 4, kind: output, shape index: {1}]
  %5 = xla_tuple %s3, %s4
  %s6 = sld [smem:[#allocation0]]
  $region129: #{tpu_custom_call.1} parent=0
    _
  %s8 = ssub.s32 1, %s6
  %s9 = scalar_select 0, %s8, %s6
  $region1: #{tpu_custom_call.1} parent=0
    #allocation2 [shape = 'u8[262144]{0}', space=vmem, size = 0x40000, scoped, tag = 'input window, operand 0']
    #allocation3 [shape = 'u8[32768]{0}', space=vmem, size = 0x8000, scoped, tag = 'input window, operand 1']
    #allocation4 [shape = 'u8[1024]{0}', space=vmem, size = 0x400, scoped, tag = 'output window, operand 0']
    #allocation5 [shape = 's32[2]{0}', space=sflag, size = 0x8, scoped, tag = 'scoped memory for tpu_custom_call.1']
    #allocation6 [shape = 'u8[1024]{0}', space=vmem, size = 0x400, scoped, tag = 'output window, operand 1']
    #allocation7 [shape = 's32[2]{0}', space=sflag, size = 0x8, scoped, tag = 'scoped memory for tpu_custom_call.1']
    %10 = vsyncpa [#allocation5], 0
    %s11 = scalar_lea.sflag [#allocation5], 1
    %12 = vsyncpa %s11, 0
    %13 = vsyncpa [#allocation7], 0
    %s14 = scalar_lea.sflag [#allocation7], 1
    %15 = vsyncpa %s14, 0
    loop: start=0, step=1, limit=4
    $region2: #{tpu_custom_call.1} parent=1 // loop_pre_header
      _
    $region3: #{tpu_custom_call.1} parent=1 // loop_header
      %s17 = sphi 0, %s21
      %p18 = scmp.ge.s32.totalorder %s17, 4
      %s27 = sphi 0, %s29
      %s30 = sphi 0, %s27
      %s31 = sphi 0, %s30
      %s47 = sphi 0, %s31
      %s61 = sphi 0, %s63
      %s64 = sphi 0, %s61
      %s65 = sphi 0, %s64
      %s81 = sphi 0, %s65
      %s85 = sphi 0, %s85
      %s87 = sphi 0, %s85
      %s88 = sphi 0, %s87
      %s102 = sphi 0, %s88
      %s108 = sphi 0, %s110
      %s111 = sphi 0, %s108
      %s112 = sphi 0, %s111
      %s128 = sphi 0, %s112
      %s134 = sphi 0, %s136
      %s137 = sphi 0, %s134
      %s138 = sphi 0, %s137
      %s154 = sphi 0, %s138
    $region4: #{tpu_custom_call.1} parent=1 // loop_header_branch
      %20 = sbr.rel (%p18) target = $region8
    $region5: #{tpu_custom_call.1} parent=1 // loop_body
      %s22 = ssub.s32 %s17, 1
      %s23 = ssub.s32 %s17, 2
      %s24 = sadd.s32 %s17, 1
      %s25 = ssub.s32 %s17, %s24
      %p26 = scmp.eq.s32.totalorder %s25, 0
      %s28 = sadd.s32 %s27, 1
      %s29 = scalar_select %p26, %s27, %s28
      %p32 = pneg %p26
      %p33 = scmp.eq.s32.totalorder %s17, 1
      %p34 = por %p32, %p33
      %p35 = scmp.ne.s32.totalorder %s27, %s30
      %p36 = scmp.eq.s32.totalorder %s17, 0
      %p37 = por %p35, %p36
      %p38 = scmp.ne.s32.totalorder %s27, %s30
      %p39 = scmp.eq.s32.totalorder %s22, 1
      %p40 = por %p38, %p39
      %p41 = scmp.ne.s32.totalorder %s30, %s31
      %p42 = scmp.eq.s32.totalorder %s22, 0
      %p43 = por %p41, %p42
      %p44 = scmp.ne.s32.totalorder %s30, %s31
      %p45 = scmp.eq.s32.totalorder %s23, 1
      %p46 = por %p44, %p45
      %p48 = scmp.ne.s32.totalorder %s31, %s47
      %p49 = scmp.eq.s32.totalorder %s23, 0
      %p50 = por %p48, %p49
      %s51 = sadd.s32 %s17, 1
      %s52 = smul.u32 %s51, 8
      %p53 = scmp.lt.s32.totalorder %s52, 15
      %s54 = scalar_select %p53, %s52, 15
      %s55 = sadd.s32 %s24, 1
      %s56 = smul.u32 %s55, 8
      %p57 = scmp.lt.s32.totalorder %s56, 15
      %s58 = scalar_select %p57, %s56, 15
      %s59 = ssub.s32 %s54, %s58
      %p60 = scmp.eq.s32.totalorder %s59, 0
      %s62 = sadd.s32 %s61, 1
      %s63 = scalar_select %p60, %s61, %s62
      %p66 = pneg %p60
      %p67 = scmp.eq.s32.totalorder %s17, 1
      %p68 = por %p66, %p67
      %p69 = scmp.ne.s32.totalorder %s61, %s64
      %p70 = scmp.eq.s32.totalorder %s17, 0
      %p71 = por %p69, %p70
      %p72 = scmp.ne.s32.totalorder %s61, %s64
      %p73 = scmp.eq.s32.totalorder %s22, 1
      %p74 = por %p72, %p73
      %p75 = scmp.ne.s32.totalorder %s64, %s65
      %p76 = scmp.eq.s32.totalorder %s22, 0
      %p77 = por %p75, %p76
      %p78 = scmp.ne.s32.totalorder %s64, %s65
      %p79 = scmp.eq.s32.totalorder %s23, 1
      %p80 = por %p78, %p79
      %p82 = scmp.ne.s32.totalorder %s65, %s81
      %p83 = scmp.eq.s32.totalorder %s23, 0
      %p84 = por %p82, %p83
      %s86 = sadd.s32 %s85, 1
      %p89 = scmp.eq.s32.totalorder %s17, 1
      %p90 = scmp.ne.s32.totalorder %s85, %s87
      %p91 = scmp.eq.s32.totalorder %s17, 0
      %p92 = por %p90, %p91
      %p93 = scmp.ne.s32.totalorder %s85, %s87
      %p94 = scmp.eq.s32.totalorder %s22, 1
      %p95 = por %p93, %p94
      %p96 = scmp.ne.s32.totalorder %s87, %s88
      %p97 = scmp.eq.s32.totalorder %s22, 0
      %p98 = por %p96, %p97
      %p99 = scmp.ne.s32.totalorder %s87, %s88
      %p100 = scmp.eq.s32.totalorder %s23, 1
      %p101 = por %p99, %p100
      %p103 = scmp.ne.s32.totalorder %s88, %s102
      %p104 = scmp.eq.s32.totalorder %s23, 0
      %p105 = por %p103, %p104
      %s106 = ssub.s32 %s17, %s24
      %p107 = scmp.eq.s32.totalorder %s106, 0
      %s109 = sadd.s32 %s108, 1
      %s110 = scalar_select %p107, %s108, %s109
      %p113 = pneg %p107
      %p114 = scmp.eq.s32.totalorder %s17, 1
      %p115 = por %p113, %p114
      %p116 = scmp.ne.s32.totalorder %s108, %s111
      %p117 = scmp.eq.s32.totalorder %s17, 0
      %p118 = por %p116, %p117
      %p119 = scmp.ne.s32.totalorder %s108, %s111
      %p120 = scmp.eq.s32.totalorder %s22, 1
      %p121 = por %p119, %p120
      %p122 = scmp.ne.s32.totalorder %s111, %s112
      %p123 = scmp.eq.s32.totalorder %s22, 0
      %p124 = por %p122, %p123
      %p125 = scmp.ne.s32.totalorder %s111, %s112
      %p126 = scmp.eq.s32.totalorder %s23, 1
      %p127 = por %p125, %p126
      %p129 = scmp.ne.s32.totalorder %s112, %s128
      %p130 = scmp.eq.s32.totalorder %s23, 0
      %p131 = por %p129, %p130
      %s132 = ssub.s32 %s17, %s24
      %p133 = scmp.eq.s32.totalorder %s132, 0
      %s135 = sadd.s32 %s134, 1
      %s136 = scalar_select %p133, %s134, %s135
      %p139 = pneg %p133
      %p140 = scmp.eq.s32.totalorder %s17, 1
      %p141 = por %p139, %p140
      %p142 = scmp.ne.s32.totalorder %s134, %s137
      %p143 = scmp.eq.s32.totalorder %s17, 0
      %p144 = por %p142, %p143
      %p145 = scmp.ne.s32.totalorder %s134, %s137
      %p146 = scmp.eq.s32.totalorder %s22, 1
      %p147 = por %p145, %p146
      %p148 = scmp.ne.s32.totalorder %s137, %s138
      %p149 = scmp.eq.s32.totalorder %s22, 0
      %p150 = por %p148, %p149
      %p151 = scmp.ne.s32.totalorder %s137, %s138
      %p152 = scmp.eq.s32.totalorder %s23, 1
      %p153 = por %p151, %p152
      %p155 = scmp.ne.s32.totalorder %s138, %s154
      %p156 = scmp.eq.s32.totalorder %s23, 0
      %p157 = por %p155, %p156
      %p158 = scmp.le.s32.totalorder 1, %s17
      %p159 = scmp.lt.s32.totalorder %s17, 3
      %p160 = pnand %p158, %p159
      %p161 = pneg %p160
      // Predicated region
      $region9: #{tpu_custom_call.1} parent=5 // pred_check
        _
      $region10: #{tpu_custom_call.1} parent=5 // pred_check_branch
        %163 = sbr.rel (%p160) target = $region12
      $region11: #{tpu_custom_call.1} parent=5 // pred_region
        %s164 = ssub.s32 %s17, 1
        // Predicated region
        $region13: #{tpu_custom_call.1} parent=11 // pred_check
          %p165 = pneg %p98
        $region14: #{tpu_custom_call.1} parent=11 // pred_check_branch
          %167 = sbr.rel (%p165) target = $region16
        $region15: #{tpu_custom_call.1} parent=11 // pred_region
          _
        $region16: #{tpu_custom_call.1} parent=11 // pred_fallthru
          _
      $region12: #{tpu_custom_call.1} parent=5 // pred_fallthru
        _
      %p168 = scmp.lt.s32.totalorder %s17, 2
      // Predicated region
      $region17: #{tpu_custom_call.1} parent=5 // pred_check
        %p169 = pneg %p168
      $region18: #{tpu_custom_call.1} parent=5 // pred_check_branch
        %171 = sbr.rel (%p169) target = $region20
      $region19: #{tpu_custom_call.1} parent=5 // pred_region
        // Predicated region
        $region21: #{tpu_custom_call.1} parent=19 // pred_check
          %p172 = pneg %p37
        $region22: #{tpu_custom_call.1} parent=19 // pred_check_branch
          %174 = sbr.rel (%p172) target = $region24
        $region23: #{tpu_custom_call.1} parent=19 // pred_region
          %s175 = sand.u32 %s27, 1
          %s176 = sand.u32 %s27, 1
          %s177 = smul.addr %s176, 256
          %s178 = scalar_lea.vmem [#allocation2], %s177
          %s179 = smul.u32 8, %s17
          %s180 = smul.addr %s179, 2
          %s181 = smul.addr %s180, 8
          %s182 = scalar_lea.vmem %s0, %s181
          // Predicated region
          $region25: #{tpu_custom_call.1} parent=23 // pred_check
            _
          $region26: #{tpu_custom_call.1} parent=23 // pred_check_branch
            %184 = sbr.rel (0) target = $region28
          $region27: #{tpu_custom_call.1} parent=23 // pred_region
            // Predicated region
            $region29: #{tpu_custom_call.1} parent=27 // pred_check
              _
            $region30: #{tpu_custom_call.1} parent=27 // pred_check_branch
              %186 = sbr.rel (0) target = $region32
            $region31: #{tpu_custom_call.1} parent=27 // pred_region
              // Predicated region
              $region44: #{tpu_custom_call.1} parent=31 // pred_check
                _
              $region45: #{tpu_custom_call.1} parent=31 // pred_check_branch
                %263 = sbr.rel (0) target = $region47
              $region46: #{tpu_custom_call.1} parent=31 // pred_region
                loop: start=0, step=1, limit=1
                $region48: #{tpu_custom_call.1} parent=46 // loop_pre_header
                  _
                $region49: #{tpu_custom_call.1} parent=46 // loop_header
                  %s265 = sphi 0, %s269
                  %p266 = scmp.ge.s32.totalorder %s265, 1
                  %s270 = sphi %s182, %s182
                  %s271 = sphi %s178, %s178
                $region50: #{tpu_custom_call.1} parent=46 // loop_header_branch
                  %268 = sbr.rel (%p266) target = $region54
                $region51: #{tpu_custom_call.1} parent=46 // loop_body
                  %v272 = vld [vmem:[%s270] sm:$0xff]
                  %273 = vst [vmem:[%s271] sm:$0xff] %v272
                  %v274 = vld [vmem:[%s270 + $0x8] sm:$0xff]
                  %275 = vst [vmem:[%s271 + $0x8] sm:$0xff] %v274
                  %v276 = vld [vmem:[%s270 + $0x10] sm:$0xff]
                  %277 = vst [vmem:[%s271 + $0x10] sm:$0xff] %v276
                  %v278 = vld [vmem:[%s270 + $0x18] sm:$0xff]
                  %279 = vst [vmem:[%s271 + $0x18] sm:$0xff] %v278
                  %v280 = vld [vmem:[%s270 + $0x20] sm:$0xff]
                  %281 = vst [vmem:[%s271 + $0x20] sm:$0xff] %v280
                  %v282 = vld [vmem:[%s270 + $0x28] sm:$0xff]
                  %283 = vst [vmem:[%s271 + $0x28] sm:$0xff] %v282
                  %v284 = vld [vmem:[%s270 + $0x30] sm:$0xff]
                  %285 = vst [vmem:[%s271 + $0x30] sm:$0xff] %v284
                  %v286 = vld [vmem:[%s270 + $0x38] sm:$0xff]
                  %287 = vst [vmem:[%s271 + $0x38] sm:$0xff] %v286
                  %v288 = vld [vmem:[%s270 + $0x40] sm:$0xff]
                  %289 = vst [vmem:[%s271 + $0x40] sm:$0xff] %v288
                  %v290 = vld [vmem:[%s270 + $0x48] sm:$0xff]
                  %291 = vst [vmem:[%s271 + $0x48] sm:$0xff] %v290
                  %v292 = vld [vmem:[%s270 + $0x50] sm:$0xff]
                  %293 = vst [vmem:[%s271 + $0x50] sm:$0xff] %v292
                  %v294 = vld [vmem:[%s270 + $0x58] sm:$0xff]
                  %295 = vst [vmem:[%s271 + $0x58] sm:$0xff] %v294
                  %v296 = vld [vmem:[%s270 + $0x60] sm:$0xff]
                  %297 = vst [vmem:[%s271 + $0x60] sm:$0xff] %v296
                  %v298 = vld [vmem:[%s270 + $0x68] sm:$0xff]
                  %299 = vst [vmem:[%s271 + $0x68] sm:$0xff] %v298
                  %v300 = vld [vmem:[%s270 + $0x70] sm:$0xff]
                  %301 = vst [vmem:[%s271 + $0x70] sm:$0xff] %v300
                  %v302 = vld [vmem:[%s270 + $0x78] sm:$0xff]
                  %303 = vst [vmem:[%s271 + $0x78] sm:$0xff] %v302
                  %v304 = vld [vmem:[%s270 + $0x100] sm:$0xff]
                  %305 = vst [vmem:[%s271 + $0x80] sm:$0xff] %v304
                  %v306 = vld [vmem:[%s270 + $0x108] sm:$0xff]
                  %307 = vst [vmem:[%s271 + $0x88] sm:$0xff] %v306
                  %v308 = vld [vmem:[%s270 + $0x110] sm:$0xff]
                  %309 = vst [vmem:[%s271 + $0x90] sm:$0xff] %v308
                  %v310 = vld [vmem:[%s270 + $0x118] sm:$0xff]
                  %311 = vst [vmem:[%s271 + $0x98] sm:$0xff] %v310
                  %v312 = vld [vmem:[%s270 + $0x120] sm:$0xff]
                  %313 = vst [vmem:[%s271 + $0xa0] sm:$0xff] %v312
                  %v314 = vld [vmem:[%s270 + $0x128] sm:$0xff]
                  %315 = vst [vmem:[%s271 + $0xa8] sm:$0xff] %v314
                  %v316 = vld [vmem:[%s270 + $0x130] sm:$0xff]
                  %317 = vst [vmem:[%s271 + $0xb0] sm:$0xff] %v316
                  %v318 = vld [vmem:[%s270 + $0x138] sm:$0xff]
                  %319 = vst [vmem:[%s271 + $0xb8] sm:$0xff] %v318
                  %v320 = vld [vmem:[%s270 + $0x140] sm:$0xff]
                  %321 = vst [vmem:[%s271 + $0xc0] sm:$0xff] %v320
                  %v322 = vld [vmem:[%s270 + $0x148] sm:$0xff]
                  %323 = vst [vmem:[%s271 + $0xc8] sm:$0xff] %v322
                  %v324 = vld [vmem:[%s270 + $0x150] sm:$0xff]
                  %325 = vst [vmem:[%s271 + $0xd0] sm:$0xff] %v324
                  %v326 = vld [vmem:[%s270 + $0x158] sm:$0xff]
                  %327 = vst [vmem:[%s271 + $0xd8] sm:$0xff] %v326
                  %v328 = vld [vmem:[%s270 + $0x160] sm:$0xff]
                  %329 = vst [vmem:[%s271 + $0xe0] sm:$0xff] %v328
                  %v330 = vld [vmem:[%s270 + $0x168] sm:$0xff]
                  %331 = vst [vmem:[%s271 + $0xe8] sm:$0xff] %v330
                  %v332 = vld [vmem:[%s270 + $0x170] sm:$0xff]
                  %333 = vst [vmem:[%s271 + $0xf0] sm:$0xff] %v332
                  %v334 = vld [vmem:[%s270 + $0x178] sm:$0xff]
                  %335 = vst [vmem:[%s271 + $0xf8] sm:$0xff] %v334
                $region52: #{tpu_custom_call.1} parent=46 // loop_footer
                  %s269 = sadd.s32 1, %s265
                $region53: #{tpu_custom_call.1} parent=46 // loop_footer_branch
                  %264 = sbr.rel target = $region49
                $region54: #{tpu_custom_call.1} parent=46 // loop_exit
                  _
              $region47: #{tpu_custom_call.1} parent=31 // pred_fallthru
                _
              // Predicated region
              $region55: #{tpu_custom_call.1} parent=31 // pred_check
                _
              $region56: #{tpu_custom_call.1} parent=31 // pred_check_branch
                %337 = sbr.rel target = $region58
              $region57: #{tpu_custom_call.1} parent=31 // pred_region
                _
              $region58: #{tpu_custom_call.1} parent=31 // pred_fallthru
                _
            $region32: #{tpu_custom_call.1} parent=27 // pred_fallthru
              _
            // Predicated region
            $region33: #{tpu_custom_call.1} parent=27 // pred_check
              _
            $region34: #{tpu_custom_call.1} parent=27 // pred_check_branch
              %188 = sbr.rel target = $region36
            $region35: #{tpu_custom_call.1} parent=27 // pred_region
              loop: start=0, step=1, limit=1
              $region37: #{tpu_custom_call.1} parent=35 // loop_pre_header
                _
              $region38: #{tpu_custom_call.1} parent=35 // loop_header
                %s191 = sphi 0, %s195
                %p192 = scmp.ge.s32.totalorder %s191, 1
                %s196 = sphi %s182, %s182
                %s197 = sphi %s178, %s178
              $region39: #{tpu_custom_call.1} parent=35 // loop_header_branch
                %194 = sbr.rel (%p192) target = $region43
              $region40: #{tpu_custom_call.1} parent=35 // loop_body
                %v198 = vld [vmem:[%s196] sm:$0xff]
                %199 = vst [vmem:[%s197] sm:$0xff] %v198
                %v200 = vld [vmem:[%s196 + $0x8] sm:$0xff]
                %201 = vst [vmem:[%s197 + $0x8] sm:$0xff] %v200
                %v202 = vld [vmem:[%s196 + $0x10] sm:$0xff]
                %203 = vst [vmem:[%s197 + $0x10] sm:$0xff] %v202
                %v204 = vld [vmem:[%s196 + $0x18] sm:$0xff]
                %205 = vst [vmem:[%s197 + $0x18] sm:$0xff] %v204
                %v206 = vld [vmem:[%s196 + $0x20] sm:$0xff]
                %207 = vst [vmem:[%s197 + $0x20] sm:$0xff] %v206
                %v208 = vld [vmem:[%s196 + $0x28] sm:$0xff]
                %209 = vst [vmem:[%s197 + $0x28] sm:$0xff] %v208
                %v210 = vld [vmem:[%s196 + $0x30] sm:$0xff]
                %211 = vst [vmem:[%s197 + $0x30] sm:$0xff] %v210
                %v212 = vld [vmem:[%s196 + $0x38] sm:$0xff]
                %213 = vst [vmem:[%s197 + $0x38] sm:$0xff] %v212
                %v214 = vld [vmem:[%s196 + $0x40] sm:$0xff]
                %215 = vst [vmem:[%s197 + $0x40] sm:$0xff] %v214
                %v216 = vld [vmem:[%s196 + $0x48] sm:$0xff]
                %217 = vst [vmem:[%s197 + $0x48] sm:$0xff] %v216
                %v218 = vld [vmem:[%s196 + $0x50] sm:$0xff]
                %219 = vst [vmem:[%s197 + $0x50] sm:$0xff] %v218
                %v220 = vld [vmem:[%s196 + $0x58] sm:$0xff]
                %221 = vst [vmem:[%s197 + $0x58] sm:$0xff] %v220
                %v222 = vld [vmem:[%s196 + $0x60] sm:$0xff]
                %223 = vst [vmem:[%s197 + $0x60] sm:$0xff] %v222
                %v224 = vld [vmem:[%s196 + $0x68] sm:$0xff]
                %225 = vst [vmem:[%s197 + $0x68] sm:$0xff] %v224
                %v226 = vld [vmem:[%s196 + $0x70] sm:$0xff]
                %227 = vst [vmem:[%s197 + $0x70] sm:$0xff] %v226
                %v228 = vld [vmem:[%s196 + $0x78] sm:$0xff]
                %229 = vst [vmem:[%s197 + $0x78] sm:$0xff] %v228
                %v230 = vld [vmem:[%s196 + $0x100] sm:$0xff]
                %231 = vst [vmem:[%s197 + $0x80] sm:$0xff] %v230
                %v232 = vld [vmem:[%s196 + $0x108] sm:$0xff]
                %233 = vst [vmem:[%s197 + $0x88] sm:$0xff] %v232
                %v234 = vld [vmem:[%s196 + $0x110] sm:$0xff]
                %235 = vst [vmem:[%s197 + $0x90] sm:$0xff] %v234
                %v236 = vld [vmem:[%s196 + $0x118] sm:$0xff]
                %237 = vst [vmem:[%s197 + $0x98] sm:$0xff] %v236
                %v238 = vld [vmem:[%s196 + $0x120] sm:$0xff]
                %239 = vst [vmem:[%s197 + $0xa0] sm:$0xff] %v238
                %v240 = vld [vmem:[%s196 + $0x128] sm:$0xff]
                %241 = vst [vmem:[%s197 + $0xa8] sm:$0xff] %v240
                %v242 = vld [vmem:[%s196 + $0x130] sm:$0xff]
                %243 = vst [vmem:[%s197 + $0xb0] sm:$0xff] %v242
                %v244 = vld [vmem:[%s196 + $0x138] sm:$0xff]
                %245 = vst [vmem:[%s197 + $0xb8] sm:$0xff] %v244
                %v246 = vld [vmem:[%s196 + $0x140] sm:$0xff]
                %247 = vst [vmem:[%s197 + $0xc0] sm:$0xff] %v246
                %v248 = vld [vmem:[%s196 + $0x148] sm:$0xff]
                %249 = vst [vmem:[%s197 + $0xc8] sm:$0xff] %v248
                %v250 = vld [vmem:[%s196 + $0x150] sm:$0xff]
                %251 = vst [vmem:[%s197 + $0xd0] sm:$0xff] %v250
                %v252 = vld [vmem:[%s196 + $0x158] sm:$0xff]
                %253 = vst [vmem:[%s197 + $0xd8] sm:$0xff] %v252
                %v254 = vld [vmem:[%s196 + $0x160] sm:$0xff]
                %255 = vst [vmem:[%s197 + $0xe0] sm:$0xff] %v254
                %v256 = vld [vmem:[%s196 + $0x168] sm:$0xff]
                %257 = vst [vmem:[%s197 + $0xe8] sm:$0xff] %v256
                %v258 = vld [vmem:[%s196 + $0x170] sm:$0xff]
                %259 = vst [vmem:[%s197 + $0xf0] sm:$0xff] %v258
                %v260 = vld [vmem:[%s196 + $0x178] sm:$0xff]
                %261 = vst [vmem:[%s197 + $0xf8] sm:$0xff] %v260
              $region41: #{tpu_custom_call.1} parent=35 // loop_footer
                %s195 = sadd.s32 1, %s191
              $region42: #{tpu_custom_call.1} parent=35 // loop_footer_branch
                %190 = sbr.rel target = $region38
              $region43: #{tpu_custom_call.1} parent=35 // loop_exit
                _
            $region36: #{tpu_custom_call.1} parent=27 // pred_fallthru
              _
          $region28: #{tpu_custom_call.1} parent=23 // pred_fallthru
            _
          %338 = vnop
        $region24: #{tpu_custom_call.1} parent=19 // pred_fallthru
          _
        // Predicated region
        $region59: #{tpu_custom_call.1} parent=19 // pred_check
          %p339 = pneg %p71
        $region60: #{tpu_custom_call.1} parent=19 // pred_check_branch
          %341 = sbr.rel (%p339) target = $region62
        $region61: #{tpu_custom_call.1} parent=19 // pred_region
          %s342 = sand.u32 %s61, 1
          %s343 = sand.u32 %s61, 1
          %s344 = smul.addr %s343, 32
          %s345 = scalar_lea.vmem [#allocation3], %s344
          %s346 = sadd.s32 %s17, 1
          %s347 = smul.u32 %s346, 8
          %p348 = scmp.lt.s32.totalorder %s347, 15
          %s349 = scalar_select %p348, %s347, 15
          %s350 = smul.addr %s349, 2
          %s351 = smul.addr %s350, 8
          %s352 = scalar_lea.vmem %s1, %s351
          // Predicated region
          $region63: #{tpu_custom_call.1} parent=61 // pred_check
            _
          $region64: #{tpu_custom_call.1} parent=61 // pred_check_branch
            %354 = sbr.rel (0) target = $region66
          $region65: #{tpu_custom_call.1} parent=61 // pred_region
            // Predicated region
            $region67: #{tpu_custom_call.1} parent=65 // pred_check
              _
            $region68: #{tpu_custom_call.1} parent=65 // pred_check_branch
              %356 = sbr.rel (0) target = $region70
            $region69: #{tpu_custom_call.1} parent=65 // pred_region
              // Predicated region
              $region82: #{tpu_custom_call.1} parent=69 // pred_check
                _
              $region83: #{tpu_custom_call.1} parent=69 // pred_check_branch
                %377 = sbr.rel (0) target = $region85
              $region84: #{tpu_custom_call.1} parent=69 // pred_region
                loop: start=0, step=1, limit=1
                $region86: #{tpu_custom_call.1} parent=84 // loop_pre_header
                  _
                $region87: #{tpu_custom_call.1} parent=84 // loop_header
                  %s379 = sphi 0, %s383
                  %p380 = scmp.ge.s32.totalorder %s379, 1
                  %s384 = sphi %s352, %s352
                  %s385 = sphi %s345, %s345
                $region88: #{tpu_custom_call.1} parent=84 // loop_header_branch
                  %382 = sbr.rel (%p380) target = $region92
                $region89: #{tpu_custom_call.1} parent=84 // loop_body
                  %v386 = vld [vmem:[%s384] sm:$0xff]
                  %387 = vst [vmem:[%s385] sm:$0xff] %v386
                  %v388 = vld [vmem:[%s384 + $0x8] sm:$0xff]
                  %389 = vst [vmem:[%s385 + $0x8] sm:$0xff] %v388
                  %v390 = vld [vmem:[%s384 + $0x100] sm:$0xff]
                  %391 = vst [vmem:[%s385 + $0x10] sm:$0xff] %v390
                  %v392 = vld [vmem:[%s384 + $0x108] sm:$0xff]
                  %393 = vst [vmem:[%s385 + $0x18] sm:$0xff] %v392
                $region90: #{tpu_custom_call.1} parent=84 // loop_footer
                  %s383 = sadd.s32 1, %s379
                $region91: #{tpu_custom_call.1} parent=84 // loop_footer_branch
                  %378 = sbr.rel target = $region87
                $region92: #{tpu_custom_call.1} parent=84 // loop_exit
                  _
              $region85: #{tpu_custom_call.1} parent=69 // pred_fallthru
                _
              // Predicated region
              $region93: #{tpu_custom_call.1} parent=69 // pred_check
                _
              $region94: #{tpu_custom_call.1} parent=69 // pred_check_branch
                %395 = sbr.rel target = $region96
              $region95: #{tpu_custom_call.1} parent=69 // pred_region
                _
              $region96: #{tpu_custom_call.1} parent=69 // pred_fallthru
                _
            $region70: #{tpu_custom_call.1} parent=65 // pred_fallthru
              _
            // Predicated region
            $region71: #{tpu_custom_call.1} parent=65 // pred_check
              _
            $region72: #{tpu_custom_call.1} parent=65 // pred_check_branch
              %358 = sbr.rel target = $region74
            $region73: #{tpu_custom_call.1} parent=65 // pred_region
              loop: start=0, step=1, limit=1
              $region75: #{tpu_custom_call.1} parent=73 // loop_pre_header
                _
              $region76: #{tpu_custom_call.1} parent=73 // loop_header
                %s361 = sphi 0, %s365
                %p362 = scmp.ge.s32.totalorder %s361, 1
                %s366 = sphi %s352, %s352
                %s367 = sphi %s345, %s345
              $region77: #{tpu_custom_call.1} parent=73 // loop_header_branch
                %364 = sbr.rel (%p362) target = $region81
              $region78: #{tpu_custom_call.1} parent=73 // loop_body
                %v368 = vld [vmem:[%s366] sm:$0xff]
                %369 = vst [vmem:[%s367] sm:$0xff] %v368
                %v370 = vld [vmem:[%s366 + $0x8] sm:$0xff]
                %371 = vst [vmem:[%s367 + $0x8] sm:$0xff] %v370
                %v372 = vld [vmem:[%s366 + $0x100] sm:$0xff]
                %373 = vst [vmem:[%s367 + $0x10] sm:$0xff] %v372
                %v374 = vld [vmem:[%s366 + $0x108] sm:$0xff]
                %375 = vst [vmem:[%s367 + $0x18] sm:$0xff] %v374
              $region79: #{tpu_custom_call.1} parent=73 // loop_footer
                %s365 = sadd.s32 1, %s361
              $region80: #{tpu_custom_call.1} parent=73 // loop_footer_branch
                %360 = sbr.rel target = $region76
              $region81: #{tpu_custom_call.1} parent=73 // loop_exit
                _
            $region74: #{tpu_custom_call.1} parent=65 // pred_fallthru
              _
          $region66: #{tpu_custom_call.1} parent=61 // pred_fallthru
            _
          %396 = vnop
        $region62: #{tpu_custom_call.1} parent=19 // pred_fallthru
          _
      $region20: #{tpu_custom_call.1} parent=5 // pred_fallthru
        _
      %p397 = scmp.le.s32.totalorder 1, %s17
      %p398 = scmp.lt.s32.totalorder %s17, 3
      %p399 = pnand %p397, %p398
      %p400 = pneg %p399
      // Predicated region
      $region97: #{tpu_custom_call.1} parent=5 // pred_check
        _
      $region98: #{tpu_custom_call.1} parent=5 // pred_check_branch
        %402 = sbr.rel (%p399) target = $region100
      $region99: #{tpu_custom_call.1} parent=5 // pred_region
        %s403 = ssub.s32 %s17, 1
        %s404 = sand.u32 %s30, 1
        %s405 = sand.u32 %s30, 1
        %s406 = smul.addr %s405, 256
        %s407 = scalar_lea.vmem [#allocation2], %s406
        // Predicated region
        $region101: #{tpu_custom_call.1} parent=99 // pred_check
          %p408 = pneg %p43
        $region102: #{tpu_custom_call.1} parent=99 // pred_check_branch
          %410 = sbr.rel (%p408) target = $region104
        $region103: #{tpu_custom_call.1} parent=99 // pred_region
          _
        $region104: #{tpu_custom_call.1} parent=99 // pred_fallthru
          _
        %s411 = sand.u32 %s64, 1
        %s412 = sand.u32 %s64, 1
        %s413 = smul.addr %s412, 32
        %s414 = scalar_lea.vmem [#allocation3], %s413
        // Predicated region
        $region105: #{tpu_custom_call.1} parent=99 // pred_check
          %p415 = pneg %p77
        $region106: #{tpu_custom_call.1} parent=99 // pred_check_branch
          %417 = sbr.rel (%p415) target = $region108
        $region107: #{tpu_custom_call.1} parent=99 // pred_region
          _
        $region108: #{tpu_custom_call.1} parent=99 // pred_fallthru
          _
        %s418 = sand.u32 %s30, 1
        %s419 = sand.u32 %s30, 1
        %s420 = smul.addr %s419, 256
        %s421 = scalar_lea.vmem [#allocation2], %s420
        %p422 = pneg %p43
        %p423 = pneg %p40
        %s424 = sand.u32 %s64, 1
        %s425 = sand.u32 %s64, 1
        %s426 = smul.addr %s425, 32
        %s427 = scalar_lea.vmem [#allocation3], %s426
        %p428 = pneg %p77
        %p429 = pneg %p74
        %p430 = pneg %p98
        %p431 = pneg %p95
        %p432 = pneg %p124
        %p433 = pneg %p121
        %s434 = sand.u32 %s111, 1
        %s435 = scalar_lea.sflag [#allocation5], %s434
        %s436 = sand.u32 %s111, 1
        %s437 = scalar_lea.vmem [#allocation4], %s436
        %p438 = pneg %p150
        %p439 = pneg %p147
        %s440 = sand.u32 %s137, 1
        %s441 = scalar_lea.sflag [#allocation7], %s440
        %s442 = sand.u32 %s137, 1
        %s443 = scalar_lea.vmem [#allocation6], %s442
        %s444 = smul.u32 8, %s22
        %s445 = sadd.s32 %s22, 1
        %s446 = smul.u32 %s445, 8
        %p447 = scmp.lt.s32.totalorder %s446, 15
        %s448 = scalar_select %p447, %s446, 15
        %v449 = vld [vmem:[%s407] sm:$0xff]
        %v450 = vld [vmem:[%s407 + $0x8] sm:$0xff]
        %v451 = vld [vmem:[%s407 + $0x10] sm:$0xff]
        %v452 = vld [vmem:[%s407 + $0x18] sm:$0xff]
        %v453 = vld [vmem:[%s407 + $0x20] sm:$0xff]
        %v454 = vld [vmem:[%s407 + $0x28] sm:$0xff]
        %v455 = vld [vmem:[%s407 + $0x30] sm:$0xff]
        %v456 = vld [vmem:[%s407 + $0x38] sm:$0xff]
        %v457 = vld [vmem:[%s407 + $0x40] sm:$0xff]
        %v458 = vld [vmem:[%s407 + $0x48] sm:$0xff]
        %v459 = vld [vmem:[%s407 + $0x50] sm:$0xff]
        %v460 = vld [vmem:[%s407 + $0x58] sm:$0xff]
        %v461 = vld [vmem:[%s407 + $0x60] sm:$0xff]
        %v462 = vld [vmem:[%s407 + $0x68] sm:$0xff]
        %v463 = vld [vmem:[%s407 + $0x70] sm:$0xff]
        %v464 = vld [vmem:[%s407 + $0x78] sm:$0xff]
        %v465 = vld [vmem:[%s407 + $0x80] sm:$0xff]
        %v466 = vld [vmem:[%s407 + $0x88] sm:$0xff]
        %v467 = vld [vmem:[%s407 + $0x90] sm:$0xff]
        %v468 = vld [vmem:[%s407 + $0x98] sm:$0xff]
        %v469 = vld [vmem:[%s407 + $0xa0] sm:$0xff]
        %v470 = vld [vmem:[%s407 + $0xa8] sm:$0xff]
        %v471 = vld [vmem:[%s407 + $0xb0] sm:$0xff]
        %v472 = vld [vmem:[%s407 + $0xb8] sm:$0xff]
        %v473 = vld [vmem:[%s407 + $0xc0] sm:$0xff]
        %v474 = vld [vmem:[%s407 + $0xc8] sm:$0xff]
        %v475 = vld [vmem:[%s407 + $0xd0] sm:$0xff]
        %v476 = vld [vmem:[%s407 + $0xd8] sm:$0xff]
        %v477 = vld [vmem:[%s407 + $0xe0] sm:$0xff]
        %v478 = vld [vmem:[%s407 + $0xe8] sm:$0xff]
        %v479 = vld [vmem:[%s407 + $0xf0] sm:$0xff]
        %v480 = vld [vmem:[%s407 + $0xf8] sm:$0xff]
        %v481 = vld [vmem:[%s414] sm:$0xff]
        %v482 = vld [vmem:[%s414 + $0x8] sm:$0xff]
        %v483 = vld [vmem:[%s414 + $0x10] sm:$0xff]
        %v484 = vld [vmem:[%s414 + $0x18] sm:$0xff]
        %p485 = scmp.eq.s32.totalorder %s22, 1
        %s486 = scalar_select %p485, 1, 0
        %v487 = vstv %s486
        %vm488 = vcmp.eq.s32.totalorder %v487, 1
        %v489 = vsel %vm488, 0.0, %v481
        %v490 = vsel %vm488, 0.0, %v482
        %v491 = vsel %vm488, 0.0, %v483
        %v492 = vsel %vm488, 0.0, %v484
        %vm525 = vcmask 1046528
        %v526 = vrot.slane %v449, 1
        %v527 = vrot.slane %v450, 1
        %v528 = vsel %vm525, %v526, %v527
        %v529 = vrot.slane %v451, 1
        %v530 = vrot.slane %v452, 1
        %v531 = vsel %vm525, %v529, %v530
        %v532 = vrot.slane %v453, 1
        %v533 = vrot.slane %v454, 1
        %v534 = vsel %vm525, %v532, %v533
        %v535 = vrot.slane %v455, 1
        %v536 = vrot.slane %v456, 1
        %v537 = vsel %vm525, %v535, %v536
        %v538 = vrot.slane %v457, 1
        %v539 = vrot.slane %v458, 1
        %v540 = vsel %vm525, %v538, %v539
        %v541 = vrot.slane %v459, 1
        %v542 = vrot.slane %v460, 1
        %v543 = vsel %vm525, %v541, %v542
        %v544 = vrot.slane %v461, 1
        %v545 = vrot.slane %v462, 1
        %v546 = vsel %vm525, %v544, %v545
        %v547 = vrot.slane %v463, 1
        %v548 = vrot.slane %v464, 1
        %v549 = vsel %vm525, %v547, %v548
        %v550 = vrot.slane %v465, 1
        %v551 = vrot.slane %v466, 1
        %v552 = vsel %vm525, %v550, %v551
        %v553 = vrot.slane %v467, 1
        %v554 = vrot.slane %v468, 1
        %v555 = vsel %vm525, %v553, %v554
        %v556 = vrot.slane %v469, 1
        %v557 = vrot.slane %v470, 1
        %v558 = vsel %vm525, %v556, %v557
        %v559 = vrot.slane %v471, 1
        %v560 = vrot.slane %v472, 1
        %v561 = vsel %vm525, %v559, %v560
        %v562 = vrot.slane %v473, 1
        %v563 = vrot.slane %v474, 1
        %v564 = vsel %vm525, %v562, %v563
        %v565 = vrot.slane %v475, 1
        %v566 = vrot.slane %v476, 1
        %v567 = vsel %vm525, %v565, %v566
        %v568 = vrot.slane %v477, 1
        %v569 = vrot.slane %v478, 1
        %v570 = vsel %vm525, %v568, %v569
        %v571 = vrot.slane %v479, 1
        %v572 = vrot.slane %v480, 1
        %v573 = vsel %vm525, %v571, %v572
        %v590 = vsel %vm525, %v527, 0.0
        %v591 = vsel %vm525, %v530, 0.0
        %v592 = vsel %vm525, %v533, 0.0
        %v593 = vsel %vm525, %v536, 0.0
        %v594 = vsel %vm525, %v539, 0.0
        %v595 = vsel %vm525, %v542, 0.0
        %v596 = vsel %vm525, %v545, 0.0
        %v597 = vsel %vm525, %v548, 0.0
        %v598 = vsel %vm525, %v551, 0.0
        %v599 = vsel %vm525, %v554, 0.0
        %v600 = vsel %vm525, %v557, 0.0
        %v601 = vsel %vm525, %v560, 0.0
        %v602 = vsel %vm525, %v563, 0.0
        %v603 = vsel %vm525, %v566, 0.0
        %v604 = vsel %vm525, %v569, 0.0
        %v605 = vsel %vm525, %v572, 0.0
        %v610 = vrot.slane %v489, 1
        %v611 = vrot.slane %v490, 1
        %v612 = vsel %vm525, %v610, %v611
        %v613 = vrot.slane %v491, 1
        %v614 = vrot.slane %v492, 1
        %v615 = vsel %vm525, %v613, %v614
        %v618 = vsel %vm525, %v611, 0.0
        %v619 = vsel %vm525, %v614, 0.0
        %636 = vrot.lane.b32.xlu0 %v528, 4
        %v637 = vpop.permute.xlu0 %636
        %638 = vrot.lane.b32.xlu0 %v590, 4
        %v639 = vpop.permute.xlu0 %638
        %640 = vrot.lane.b32.xlu0 %v531, 4
        %v641 = vpop.permute.xlu0 %640
        %642 = vrot.lane.b32.xlu0 %v591, 4
        %v643 = vpop.permute.xlu0 %642
        %644 = vrot.lane.b32.xlu0 %v534, 4
        %v645 = vpop.permute.xlu0 %644
        %646 = vrot.lane.b32.xlu0 %v592, 4
        %v647 = vpop.permute.xlu0 %646
        %648 = vrot.lane.b32.xlu0 %v537, 4
        %v649 = vpop.permute.xlu0 %648
        %650 = vrot.lane.b32.xlu0 %v593, 4
        %v651 = vpop.permute.xlu0 %650
        %652 = vrot.lane.b32.xlu0 %v540, 4
        %v653 = vpop.permute.xlu0 %652
        %654 = vrot.lane.b32.xlu0 %v594, 4
        %v655 = vpop.permute.xlu0 %654
        %656 = vrot.lane.b32.xlu0 %v543, 4
        %v657 = vpop.permute.xlu0 %656
        %658 = vrot.lane.b32.xlu0 %v595, 4
        %v659 = vpop.permute.xlu0 %658
        %660 = vrot.lane.b32.xlu0 %v546, 4
        %v661 = vpop.permute.xlu0 %660
        %662 = vrot.lane.b32.xlu0 %v596, 4
        %v663 = vpop.permute.xlu0 %662
        %664 = vrot.lane.b32.xlu0 %v549, 4
        %v665 = vpop.permute.xlu0 %664
        %666 = vrot.lane.b32.xlu0 %v597, 4
        %v667 = vpop.permute.xlu0 %666
        %668 = vrot.lane.b32.xlu0 %v552, 4
        %v669 = vpop.permute.xlu0 %668
        %670 = vrot.lane.b32.xlu0 %v598, 4
        %v671 = vpop.permute.xlu0 %670
        %672 = vrot.lane.b32.xlu0 %v555, 4
        %v673 = vpop.permute.xlu0 %672
        %674 = vrot.lane.b32.xlu0 %v599, 4
        %v675 = vpop.permute.xlu0 %674
        %676 = vrot.lane.b32.xlu0 %v558, 4
        %v677 = vpop.permute.xlu0 %676
        %678 = vrot.lane.b32.xlu0 %v600, 4
        %v679 = vpop.permute.xlu0 %678
        %680 = vrot.lane.b32.xlu0 %v561, 4
        %v681 = vpop.permute.xlu0 %680
        %682 = vrot.lane.b32.xlu0 %v601, 4
        %v683 = vpop.permute.xlu0 %682
        %684 = vrot.lane.b32.xlu0 %v564, 4
        %v685 = vpop.permute.xlu0 %684
        %686 = vrot.lane.b32.xlu0 %v602, 4
        %v687 = vpop.permute.xlu0 %686
        %688 = vrot.lane.b32.xlu0 %v567, 4
        %v689 = vpop.permute.xlu0 %688
        %690 = vrot.lane.b32.xlu0 %v603, 4
        %v691 = vpop.permute.xlu0 %690
        %692 = vrot.lane.b32.xlu0 %v570, 4
        %v693 = vpop.permute.xlu0 %692
        %694 = vrot.lane.b32.xlu0 %v604, 4
        %v695 = vpop.permute.xlu0 %694
        %696 = vrot.lane.b32.xlu0 %v573, 4
        %v697 = vpop.permute.xlu0 %696
        %698 = vrot.lane.b32.xlu0 %v605, 4
        %v699 = vpop.permute.xlu0 %698
        %732 = vrot.lane.b32.xlu0 %v451, 8
        %v733 = vpop.permute.xlu0 %732
        %734 = vrot.lane.b32.xlu0 %v452, 8
        %v735 = vpop.permute.xlu0 %734
        %736 = vrot.lane.b32.xlu0 %v453, 8
        %v737 = vpop.permute.xlu0 %736
        %738 = vrot.lane.b32.xlu0 %v454, 8
        %v739 = vpop.permute.xlu0 %738
        %740 = vrot.lane.b32.xlu0 %v455, 8
        %v741 = vpop.permute.xlu0 %740
        %742 = vrot.lane.b32.xlu0 %v456, 8
        %v743 = vpop.permute.xlu0 %742
        %744 = vrot.lane.b32.xlu0 %v457, 8
        %v745 = vpop.permute.xlu0 %744
        %746 = vrot.lane.b32.xlu0 %v458, 8
        %v747 = vpop.permute.xlu0 %746
        %748 = vrot.lane.b32.xlu0 %v459, 8
        %v749 = vpop.permute.xlu0 %748
        %750 = vrot.lane.b32.xlu0 %v460, 8
        %v751 = vpop.permute.xlu0 %750
        %752 = vrot.lane.b32.xlu0 %v461, 8
        %v753 = vpop.permute.xlu0 %752
        %754 = vrot.lane.b32.xlu0 %v462, 8
        %v755 = vpop.permute.xlu0 %754
        %756 = vrot.lane.b32.xlu0 %v463, 8
        %v757 = vpop.permute.xlu0 %756
        %758 = vrot.lane.b32.xlu0 %v464, 8
        %v759 = vpop.permute.xlu0 %758
        %760 = vrot.lane.b32.xlu0 %v489, 8
        %v761 = vpop.permute.xlu0 %760
        %762 = vrot.lane.b32.xlu0 %v490, 8
        %v763 = vpop.permute.xlu0 %762
        %764 = vrot.lane.b32.xlu0 %v467, 8
        %v765 = vpop.permute.xlu0 %764
        %766 = vrot.lane.b32.xlu0 %v468, 8
        %v767 = vpop.permute.xlu0 %766
        %768 = vrot.lane.b32.xlu0 %v469, 8
        %v769 = vpop.permute.xlu0 %768
        %770 = vrot.lane.b32.xlu0 %v470, 8
        %v771 = vpop.permute.xlu0 %770
        %772 = vrot.lane.b32.xlu0 %v471, 8
        %v773 = vpop.permute.xlu0 %772
        %774 = vrot.lane.b32.xlu0 %v472, 8
        %v775 = vpop.permute.xlu0 %774
        %776 = vrot.lane.b32.xlu0 %v473, 8
        %v777 = vpop.permute.xlu0 %776
        %778 = vrot.lane.b32.xlu0 %v474, 8
        %v779 = vpop.permute.xlu0 %778
        %780 = vrot.lane.b32.xlu0 %v475, 8
        %v781 = vpop.permute.xlu0 %780
        %782 = vrot.lane.b32.xlu0 %v476, 8
        %v783 = vpop.permute.xlu0 %782
        %784 = vrot.lane.b32.xlu0 %v477, 8
        %v785 = vpop.permute.xlu0 %784
        %786 = vrot.lane.b32.xlu0 %v478, 8
        %v787 = vpop.permute.xlu0 %786
        %788 = vrot.lane.b32.xlu0 %v479, 8
        %v789 = vpop.permute.xlu0 %788
        %790 = vrot.lane.b32.xlu0 %v480, 8
        %v791 = vpop.permute.xlu0 %790
        %792 = vrot.lane.b32.xlu0 %v491, 8
        %v793 = vpop.permute.xlu0 %792
        %794 = vrot.lane.b32.xlu0 %v492, 8
        %v795 = vpop.permute.xlu0 %794
        %830 = vrot.lane.b32.xlu0 %v531, 12
        %v831 = vpop.permute.xlu0 %830
        %832 = vrot.lane.b32.xlu0 %v591, 12
        %v833 = vpop.permute.xlu0 %832
        %834 = vrot.lane.b32.xlu0 %v534, 12
        %v835 = vpop.permute.xlu0 %834
        %836 = vrot.lane.b32.xlu0 %v592, 12
        %v837 = vpop.permute.xlu0 %836
        %838 = vrot.lane.b32.xlu0 %v537, 12
        %v839 = vpop.permute.xlu0 %838
        %840 = vrot.lane.b32.xlu0 %v593, 12
        %v841 = vpop.permute.xlu0 %840
        %842 = vrot.lane.b32.xlu0 %v540, 12
        %v843 = vpop.permute.xlu0 %842
        %844 = vrot.lane.b32.xlu0 %v594, 12
        %v845 = vpop.permute.xlu0 %844
        %846 = vrot.lane.b32.xlu0 %v543, 12
        %v847 = vpop.permute.xlu0 %846
        %848 = vrot.lane.b32.xlu0 %v595, 12
        %v849 = vpop.permute.xlu0 %848
        %850 = vrot.lane.b32.xlu0 %v546, 12
        %v851 = vpop.permute.xlu0 %850
        %852 = vrot.lane.b32.xlu0 %v596, 12
        %v853 = vpop.permute.xlu0 %852
        %854 = vrot.lane.b32.xlu0 %v549, 12
        %v855 = vpop.permute.xlu0 %854
        %856 = vrot.lane.b32.xlu0 %v597, 12
        %v857 = vpop.permute.xlu0 %856
        %858 = vrot.lane.b32.xlu0 %v612, 12
        %v859 = vpop.permute.xlu0 %858
        %860 = vrot.lane.b32.xlu0 %v618, 12
        %v861 = vpop.permute.xlu0 %860
        %862 = vrot.lane.b32.xlu0 %v555, 12
        %v863 = vpop.permute.xlu0 %862
        %864 = vrot.lane.b32.xlu0 %v599, 12
        %v865 = vpop.permute.xlu0 %864
        %866 = vrot.lane.b32.xlu0 %v558, 12
        %v867 = vpop.permute.xlu0 %866
        %868 = vrot.lane.b32.xlu0 %v600, 12
        %v869 = vpop.permute.xlu0 %868
        %870 = vrot.lane.b32.xlu0 %v561, 12
        %v871 = vpop.permute.xlu0 %870
        %872 = vrot.lane.b32.xlu0 %v601, 12
        %v873 = vpop.permute.xlu0 %872
        %874 = vrot.lane.b32.xlu0 %v564, 12
        %v875 = vpop.permute.xlu0 %874
        %876 = vrot.lane.b32.xlu0 %v602, 12
        %v877 = vpop.permute.xlu0 %876
        %878 = vrot.lane.b32.xlu0 %v567, 12
        %v879 = vpop.permute.xlu0 %878
        %880 = vrot.lane.b32.xlu0 %v603, 12
        %v881 = vpop.permute.xlu0 %880
        %882 = vrot.lane.b32.xlu0 %v570, 12
        %v883 = vpop.permute.xlu0 %882
        %884 = vrot.lane.b32.xlu0 %v604, 12
        %v885 = vpop.permute.xlu0 %884
        %886 = vrot.lane.b32.xlu0 %v573, 12
        %v887 = vpop.permute.xlu0 %886
        %888 = vrot.lane.b32.xlu0 %v605, 12
        %v889 = vpop.permute.xlu0 %888
        %890 = vrot.lane.b32.xlu0 %v615, 12
        %v891 = vpop.permute.xlu0 %890
        %892 = vrot.lane.b32.xlu0 %v619, 12
        %v893 = vpop.permute.xlu0 %892
        %vm926 = vcmask 31744
        %v927 = vsel %vm926, %v449, %v637
        %v928 = vsel %vm926, %v450, %v639
        %v929 = vsel %vm926, %v451, %v641
        %v930 = vsel %vm926, %v452, %v643
        %v931 = vsel %vm926, %v453, %v645
        %v932 = vsel %vm926, %v454, %v647
        %v933 = vsel %vm926, %v455, %v649
        %v934 = vsel %vm926, %v456, %v651
        %v935 = vsel %vm926, %v457, %v653
        %v936 = vsel %vm926, %v458, %v655
        %v937 = vsel %vm926, %v459, %v657
        %v938 = vsel %vm926, %v460, %v659
        %v939 = vsel %vm926, %v461, %v661
        %v940 = vsel %vm926, %v462, %v663
        %v941 = vsel %vm926, %v463, %v665
        %v942 = vsel %vm926, %v464, %v667
        %v943 = vsel %vm926, %v465, %v669
        %v944 = vsel %vm926, %v466, %v671
        %v945 = vsel %vm926, %v467, %v673
        %v946 = vsel %vm926, %v468, %v675
        %v947 = vsel %vm926, %v469, %v677
        %v948 = vsel %vm926, %v470, %v679
        %v949 = vsel %vm926, %v471, %v681
        %v950 = vsel %vm926, %v472, %v683
        %v951 = vsel %vm926, %v473, %v685
        %v952 = vsel %vm926, %v474, %v687
        %v953 = vsel %vm926, %v475, %v689
        %v954 = vsel %vm926, %v476, %v691
        %v955 = vsel %vm926, %v477, %v693
        %v956 = vsel %vm926, %v478, %v695
        %v957 = vsel %vm926, %v479, %v697
        %v958 = vsel %vm926, %v480, %v699
        %vm959 = vcmask 64512
        %v960 = vsel %vm959, %v927, %v733
        %v961 = vsel %vm959, %v928, %v735
        %v962 = vsel %vm959, %v929, %v737
        %v963 = vsel %vm959, %v930, %v739
        %v964 = vsel %vm959, %v931, %v741
        %v965 = vsel %vm959, %v932, %v743
        %v966 = vsel %vm959, %v933, %v745
        %v967 = vsel %vm959, %v934, %v747
        %v968 = vsel %vm959, %v935, %v749
        %v969 = vsel %vm959, %v936, %v751
        %v970 = vsel %vm959, %v937, %v753
        %v971 = vsel %vm959, %v938, %v755
        %v972 = vsel %vm959, %v939, %v757
        %v973 = vsel %vm959, %v940, %v759
        %v974 = vsel %vm959, %v941, %v761
        %v975 = vsel %vm959, %v942, %v763
        %v976 = vsel %vm959, %v943, %v765
        %v977 = vsel %vm959, %v944, %v767
        %v978 = vsel %vm959, %v945, %v769
        %v979 = vsel %vm959, %v946, %v771
        %v980 = vsel %vm959, %v947, %v773
        %v981 = vsel %vm959, %v948, %v775
        %v982 = vsel %vm959, %v949, %v777
        %v983 = vsel %vm959, %v950, %v779
        %v984 = vsel %vm959, %v951, %v781
        %v985 = vsel %vm959, %v952, %v783
        %v986 = vsel %vm959, %v953, %v785
        %v987 = vsel %vm959, %v954, %v787
        %v988 = vsel %vm959, %v955, %v789
        %v989 = vsel %vm959, %v956, %v791
        %v990 = vsel %vm959, %v957, %v793
        %v991 = vsel %vm959, %v958, %v795
        %vm992 = vcmask 97280
        %v993 = vsel %vm992, %v960, %v831
        %v994 = vsel %vm992, %v961, %v833
        %v995 = vsel %vm992, %v962, %v835
        %v996 = vsel %vm992, %v963, %v837
        %v997 = vsel %vm992, %v964, %v839
        %v998 = vsel %vm992, %v965, %v841
        %v999 = vsel %vm992, %v966, %v843
        %v1000 = vsel %vm992, %v967, %v845
        %v1001 = vsel %vm992, %v968, %v847
        %v1002 = vsel %vm992, %v969, %v849
        %v1003 = vsel %vm992, %v970, %v851
        %v1004 = vsel %vm992, %v971, %v853
        %v1005 = vsel %vm992, %v972, %v855
        %v1006 = vsel %vm992, %v973, %v857
        %v1007 = vsel %vm992, %v974, %v859
        %v1008 = vsel %vm992, %v975, %v861
        %v1009 = vsel %vm992, %v976, %v863
        %v1010 = vsel %vm992, %v977, %v865
        %v1011 = vsel %vm992, %v978, %v867
        %v1012 = vsel %vm992, %v979, %v869
        %v1013 = vsel %vm992, %v980, %v871
        %v1014 = vsel %vm992, %v981, %v873
        %v1015 = vsel %vm992, %v982, %v875
        %v1016 = vsel %vm992, %v983, %v877
        %v1017 = vsel %vm992, %v984, %v879
        %v1018 = vsel %vm992, %v985, %v881
        %v1019 = vsel %vm992, %v986, %v883
        %v1020 = vsel %vm992, %v987, %v885
        %v1021 = vsel %vm992, %v988, %v887
        %v1022 = vsel %vm992, %v989, %v889
        %v1023 = vsel %vm992, %v990, %v891
        %v1024 = vsel %vm992, %v991, %v893
        %v1025 = vld [vmem:[%s2] sm:$0xff]
        %v1026 = vld [vmem:[%s2 + $0x8] sm:$0xff]
        %vm1027 = vcmask 130048
        %v1029 = vsel %vm1027, %v993, 0
        %v1032 = vsel %vm1027, %v994, 0
        %v1035 = vsel %vm1027, %v995, 0
        %v1038 = vsel %vm1027, %v996, 0
        %v1041 = vsel %vm1027, %v997, 0
        %v1044 = vsel %vm1027, %v998, 0
        %v1047 = vsel %vm1027, %v999, 0
        %v1050 = vsel %vm1027, %v1000, 0
        %v1053 = vsel %vm1027, %v1001, 0
        %v1056 = vsel %vm1027, %v1002, 0
        %v1059 = vsel %vm1027, %v1003, 0
        %v1062 = vsel %vm1027, %v1004, 0
        %v1065 = vsel %vm1027, %v1005, 0
        %v1068 = vsel %vm1027, %v1006, 0
        %v1071 = vsel %vm1027, %v1007, 0
        %v1074 = vsel %vm1027, %v1008, 0
        %v1077 = vsel %vm1027, %v1009, 0
        %v1080 = vsel %vm1027, %v1010, 0
        %v1083 = vsel %vm1027, %v1011, 0
        %v1086 = vsel %vm1027, %v1012, 0
        %v1089 = vsel %vm1027, %v1013, 0
        %v1092 = vsel %vm1027, %v1014, 0
        %v1095 = vsel %vm1027, %v1015, 0
        %v1098 = vsel %vm1027, %v1016, 0
        %v1101 = vsel %vm1027, %v1017, 0
        %v1104 = vsel %vm1027, %v1018, 0
        %v1107 = vsel %vm1027, %v1019, 0
        %v1110 = vsel %vm1027, %v1020, 0
        %v1113 = vsel %vm1027, %v1021, 0
        %v1116 = vsel %vm1027, %v1022, 0
        %v1119 = vsel %vm1027, %v1023, 0
        %v1122 = vsel %vm1027, %v1024, 0
        %1124 = vmatprep.subr.mxu0 0.0
        %1125 = vmatpush1.msra.mxu0 %v1025
        %1126 = vmatprep.subr.mxu0 0.0
        %1127 = vmatpush1.msra.mxu0 %v1026
        %1128 = vmatprep.subr.mxu0 0.0
        %1129 = vmatpush1.msra.mxu0 0.0
        %1130 = vmatprep.subr.mxu0 0.0
        %1131 = vmatpush1.msra.mxu0 0.0
        %1132 = vmatprep.subr.mxu0 0.0
        %1133 = vmatpush1.msra.mxu0 0.0
        %1134 = vmatprep.subr.mxu0 0.0
        %1135 = vmatpush1.msra.mxu0 0.0
        %1136 = vmatprep.subr.mxu0 0.0
        %1137 = vmatpush1.msra.mxu0 0.0
        %1138 = vmatprep.subr.mxu0 0.0
        %1139 = vmatpush1.msra.mxu0 0.0
        %1140 = vmatprep.subr.mxu0 0.0
        %1141 = vmatpush1.msra.mxu0 0.0
        %1142 = vmatprep.subr.mxu0 0.0
        %1143 = vmatpush1.msra.mxu0 0.0
        %1144 = vmatprep.subr.mxu0 0.0
        %1145 = vmatpush1.msra.mxu0 0.0
        %1146 = vmatprep.subr.mxu0 0.0
        %1147 = vmatpush1.msra.mxu0 0.0
        %1148 = vmatprep.subr.mxu0 0.0
        %1149 = vmatpush1.msra.mxu0 0.0
        %1150 = vmatprep.subr.mxu0 0.0
        %1151 = vmatpush1.msra.mxu0 0.0
        %1152 = vmatprep.subr.mxu0 0.0
        %1153 = vmatpush1.msra.mxu0 0.0
        %1154 = vmatprep.subr.mxu0 0.0
        %1155 = vmatpush1.msra.mxu0 0.0
        %1156 = vmatprep.subr.mxu0 0.0
        %1157 = vmatpush1.msra.mxu0 0.0
        %1158 = vmatprep.subr.mxu0 0.0
        %1159 = vmatpush1.msra.mxu0 0.0
        %1160 = vmatprep.subr.mxu0 0.0
        %1161 = vmatpush1.msra.mxu0 0.0
        %1162 = vmatprep.subr.mxu0 0.0
        %1163 = vmatpush1.msra.mxu0 0.0
        %1164 = vmatprep.subr.mxu0 0.0
        %1165 = vmatpush1.msra.mxu0 0.0
        %1166 = vmatprep.subr.mxu0 0.0
        %1167 = vmatpush1.msra.mxu0 0.0
        %1168 = vmatprep.subr.mxu0 0.0
        %1169 = vmatpush1.msra.mxu0 0.0
        %1170 = vmatprep.subr.mxu0 0.0
        %1171 = vmatpush1.msra.mxu0 0.0
        %1172 = vmatprep.subr.mxu0 0.0
        %1173 = vmatpush1.msra.mxu0 0.0
        %1174 = vmatprep.subr.mxu0 0.0
        %1175 = vmatpush1.msra.mxu0 0.0
        %1176 = vmatprep.subr.mxu0 0.0
        %1177 = vmatpush1.msra.mxu0 0.0
        %1178 = vmatprep.subr.mxu0 0.0
        %1179 = vmatpush1.msra.mxu0 0.0
        %1180 = vmatprep.subr.mxu0 0.0
        %1181 = vmatpush1.msra.mxu0 0.0
        %1182 = vmatprep.subr.mxu0 0.0
        %1183 = vmatpush1.msra.mxu0 0.0
        %1184 = vmatprep.subr.mxu0 0.0
        %1185 = vmatpush1.msra.mxu0 0.0
        %1186 = vmatprep.subr.mxu0 0.0
        %1187 = vmatpush1.msra.mxu0 0.0
        %1188 = vmatprep.mubr.f32.mxu0 0.0
        %1189 = vmatmul.mubr.f32.gmra.mrb[0].mxu0 %v1029
        %v1190 = vpop.f32.mrb[0].mxu0
        %v1191 = vadd.f32 0.0, %v1190
        %v1192 = vpop.f32.mrb[0].mxu0
        %1193 = vmatprep.mubr.f32.mxu0 0.0
        %1194 = vmatmul.mubr.f32.gmra.mrb[0].mxu0 %v1032
        %v1195 = vpop.f32.mrb[0].mxu0
        %v1196 = vadd.f32 0.0, %v1195
        %v1197 = vpop.f32.mrb[0].mxu0
        %1198 = vmatprep.mubr.f32.mxu0 0.0
        %1199 = vmatmul.mubr.f32.gmra.mrb[0].mxu0 %v1035
        %v1200 = vpop.f32.mrb[0].mxu0
        %v1201 = vadd.f32 0.0, %v1200
        %v1202 = vpop.f32.mrb[0].mxu0
        %1203 = vmatprep.mubr.f32.mxu0 0.0
        %1204 = vmatmul.mubr.f32.gmra.mrb[0].mxu0 %v1038
        %v1205 = vpop.f32.mrb[0].mxu0
        %v1206 = vadd.f32 0.0, %v1205
        %v1207 = vpop.f32.mrb[0].mxu0
        %1208 = vmatprep.mubr.f32.mxu0 0.0
        %1209 = vmatmul.mubr.f32.gmra.mrb[0].mxu0 %v1041
        %v1210 = vpop.f32.mrb[0].mxu0
        %v1211 = vadd.f32 0.0, %v1210
        %v1212 = vpop.f32.mrb[0].mxu0
        %1213 = vmatprep.mubr.f32.mxu0 0.0
        %1214 = vmatmul.mubr.f32.gmra.mrb[0].mxu0 %v1044
        %v1215 = vpop.f32.mrb[0].mxu0
        %v1216 = vadd.f32 0.0, %v1215
        %v1217 = vpop.f32.mrb[0].mxu0
        %1218 = vmatprep.mubr.f32.mxu0 0.0
        %1219 = vmatmul.mubr.f32.gmra.mrb[0].mxu0 %v1047
        %v1220 = vpop.f32.mrb[0].mxu0
        %v1221 = vadd.f32 0.0, %v1220
        %v1222 = vpop.f32.mrb[0].mxu0
        %1223 = vmatprep.mubr.f32.mxu0 0.0
        %1224 = vmatmul.mubr.f32.gmra.mrb[0].mxu0 %v1050
        %v1225 = vpop.f32.mrb[0].mxu0
        %v1226 = vadd.f32 0.0, %v1225
        %v1227 = vpop.f32.mrb[0].mxu0
        %1228 = vmatprep.mubr.f32.mxu0 0.0
        %1229 = vmatmul.mubr.f32.gmra.mrb[0].mxu0 %v1053
        %v1230 = vpop.f32.mrb[0].mxu0
        %v1231 = vadd.f32 0.0, %v1230
        %v1232 = vpop.f32.mrb[0].mxu0
        %1233 = vmatprep.mubr.f32.mxu0 0.0
        %1234 = vmatmul.mubr.f32.gmra.mrb[0].mxu0 %v1056
        %v1235 = vpop.f32.mrb[0].mxu0
        %v1236 = vadd.f32 0.0, %v1235
        %v1237 = vpop.f32.mrb[0].mxu0
        %1238 = vmatprep.mubr.f32.mxu0 0.0
        %1239 = vmatmul.mubr.f32.gmra.mrb[0].mxu0 %v1059
        %v1240 = vpop.f32.mrb[0].mxu0
        %v1241 = vadd.f32 0.0, %v1240
        %v1242 = vpop.f32.mrb[0].mxu0
        %1243 = vmatprep.mubr.f32.mxu0 0.0
        %1244 = vmatmul.mubr.f32.gmra.mrb[0].mxu0 %v1062
        %v1245 = vpop.f32.mrb[0].mxu0
        %v1246 = vadd.f32 0.0, %v1245
        %v1247 = vpop.f32.mrb[0].mxu0
        %1248 = vmatprep.mubr.f32.mxu0 0.0
        %1249 = vmatmul.mubr.f32.gmra.mrb[0].mxu0 %v1065
        %v1250 = vpop.f32.mrb[0].mxu0
        %v1251 = vadd.f32 0.0, %v1250
        %v1252 = vpop.f32.mrb[0].mxu0
        %1253 = vmatprep.mubr.f32.mxu0 0.0
        %1254 = vmatmul.mubr.f32.gmra.mrb[0].mxu0 %v1068
        %v1255 = vpop.f32.mrb[0].mxu0
        %v1256 = vadd.f32 0.0, %v1255
        %v1257 = vpop.f32.mrb[0].mxu0
        %1258 = vmatprep.mubr.f32.mxu0 0.0
        %1259 = vmatmul.mubr.f32.gmra.mrb[0].mxu0 %v1071
        %v1260 = vpop.f32.mrb[0].mxu0
        %v1261 = vadd.f32 0.0, %v1260
        %v1262 = vpop.f32.mrb[0].mxu0
        %1263 = vmatprep.mubr.f32.mxu0 0.0
        %1264 = vmatmul.mubr.f32.gmra.mrb[0].mxu0 %v1074
        %v1265 = vpop.f32.mrb[0].mxu0
        %v1266 = vadd.f32 0.0, %v1265
        %v1267 = vpop.f32.mrb[0].mxu0
        %1268 = vmatprep.mubr.f32.mxu0 0.0
        %1269 = vmatmul.mubr.f32.gmra.mrb[0].mxu0 %v1077
        %v1270 = vpop.f32.mrb[0].mxu0
        %v1271 = vadd.f32 0.0, %v1270
        %v1272 = vpop.f32.mrb[0].mxu0
        %1273 = vmatprep.mubr.f32.mxu0 0.0
        %1274 = vmatmul.mubr.f32.gmra.mrb[0].mxu0 %v1080
        %v1275 = vpop.f32.mrb[0].mxu0
        %v1276 = vadd.f32 0.0, %v1275
        %v1277 = vpop.f32.mrb[0].mxu0
        %1278 = vmatprep.mubr.f32.mxu0 0.0
        %1279 = vmatmul.mubr.f32.gmra.mrb[0].mxu0 %v1083
        %v1280 = vpop.f32.mrb[0].mxu0
        %v1281 = vadd.f32 0.0, %v1280
        %v1282 = vpop.f32.mrb[0].mxu0
        %1283 = vmatprep.mubr.f32.mxu0 0.0
        %1284 = vmatmul.mubr.f32.gmra.mrb[0].mxu0 %v1086
        %v1285 = vpop.f32.mrb[0].mxu0
        %v1286 = vadd.f32 0.0, %v1285
        %v1287 = vpop.f32.mrb[0].mxu0
        %1288 = vmatprep.mubr.f32.mxu0 0.0
        %1289 = vmatmul.mubr.f32.gmra.mrb[0].mxu0 %v1089
        %v1290 = vpop.f32.mrb[0].mxu0
        %v1291 = vadd.f32 0.0, %v1290
        %v1292 = vpop.f32.mrb[0].mxu0
        %1293 = vmatprep.mubr.f32.mxu0 0.0
        %1294 = vmatmul.mubr.f32.gmra.mrb[0].mxu0 %v1092
        %v1295 = vpop.f32.mrb[0].mxu0
        %v1296 = vadd.f32 0.0, %v1295
        %v1297 = vpop.f32.mrb[0].mxu0
        %1298 = vmatprep.mubr.f32.mxu0 0.0
        %1299 = vmatmul.mubr.f32.gmra.mrb[0].mxu0 %v1095
        %v1300 = vpop.f32.mrb[0].mxu0
        %v1301 = vadd.f32 0.0, %v1300
        %v1302 = vpop.f32.mrb[0].mxu0
        %1303 = vmatprep.mubr.f32.mxu0 0.0
        %1304 = vmatmul.mubr.f32.gmra.mrb[0].mxu0 %v1098
        %v1305 = vpop.f32.mrb[0].mxu0
        %v1306 = vadd.f32 0.0, %v1305
        %v1307 = vpop.f32.mrb[0].mxu0
        %1308 = vmatprep.mubr.f32.mxu0 0.0
        %1309 = vmatmul.mubr.f32.gmra.mrb[0].mxu0 %v1101
        %v1310 = vpop.f32.mrb[0].mxu0
        %v1311 = vadd.f32 0.0, %v1310
        %v1312 = vpop.f32.mrb[0].mxu0
        %1313 = vmatprep.mubr.f32.mxu0 0.0
        %1314 = vmatmul.mubr.f32.gmra.mrb[0].mxu0 %v1104
        %v1315 = vpop.f32.mrb[0].mxu0
        %v1316 = vadd.f32 0.0, %v1315
        %v1317 = vpop.f32.mrb[0].mxu0
        %1318 = vmatprep.mubr.f32.mxu0 0.0
        %1319 = vmatmul.mubr.f32.gmra.mrb[0].mxu0 %v1107
        %v1320 = vpop.f32.mrb[0].mxu0
        %v1321 = vadd.f32 0.0, %v1320
        %v1322 = vpop.f32.mrb[0].mxu0
        %1323 = vmatprep.mubr.f32.mxu0 0.0
        %1324 = vmatmul.mubr.f32.gmra.mrb[0].mxu0 %v1110
        %v1325 = vpop.f32.mrb[0].mxu0
        %v1326 = vadd.f32 0.0, %v1325
        %v1327 = vpop.f32.mrb[0].mxu0
        %1328 = vmatprep.mubr.f32.mxu0 0.0
        %1329 = vmatmul.mubr.f32.gmra.mrb[0].mxu0 %v1113
        %v1330 = vpop.f32.mrb[0].mxu0
        %v1331 = vadd.f32 0.0, %v1330
        %v1332 = vpop.f32.mrb[0].mxu0
        %1333 = vmatprep.mubr.f32.mxu0 0.0
        %1334 = vmatmul.mubr.f32.gmra.mrb[0].mxu0 %v1116
        %v1335 = vpop.f32.mrb[0].mxu0
        %v1336 = vadd.f32 0.0, %v1335
        %v1337 = vpop.f32.mrb[0].mxu0
        %1338 = vmatprep.mubr.f32.mxu0 0.0
        %1339 = vmatmul.mubr.f32.gmra.mrb[0].mxu0 %v1119
        %v1340 = vpop.f32.mrb[0].mxu0
        %v1341 = vadd.f32 0.0, %v1340
        %v1342 = vpop.f32.mrb[0].mxu0
        %1343 = vmatprep.mubr.f32.mxu0 0.0
        %1344 = vmatmul.mubr.f32.gmra.mrb[0].mxu0 %v1122
        %v1345 = vpop.f32.mrb[0].mxu0
        %v1346 = vadd.f32 0.0, %v1345
        %v1347 = vpop.f32.mrb[0].mxu0
        %1348 = vdwg.mxu0
        %vm1349 = vcmask 261120
        %v1350 = vsel %vm1349, %v1191, 0.0
        %v1351 = vsel %vm1349, %v1196, 0.0
        %v1352 = vadd.f32 %v1350, %v1351
        %v1353 = vsel %vm1349, %v1201, 0.0
        %v1354 = vadd.f32 %v1352, %v1353
        %v1355 = vsel %vm1349, %v1206, 0.0
        %v1356 = vadd.f32 %v1354, %v1355
        %v1357 = vsel %vm1349, %v1211, 0.0
        %v1358 = vadd.f32 %v1356, %v1357
        %v1359 = vsel %vm1349, %v1216, 0.0
        %v1360 = vadd.f32 %v1358, %v1359
        %v1361 = vsel %vm1349, %v1221, 0.0
        %v1362 = vadd.f32 %v1360, %v1361
        %v1363 = vsel %vm1349, %v1226, 0.0
        %v1364 = vadd.f32 %v1362, %v1363
        %v1365 = vsel %vm1349, %v1231, 0.0
        %v1366 = vadd.f32 %v1364, %v1365
        %v1367 = vsel %vm1349, %v1236, 0.0
        %v1368 = vadd.f32 %v1366, %v1367
        %v1369 = vsel %vm1349, %v1241, 0.0
        %v1370 = vadd.f32 %v1368, %v1369
        %v1371 = vsel %vm1349, %v1246, 0.0
        %v1372 = vadd.f32 %v1370, %v1371
        %v1373 = vsel %vm1349, %v1251, 0.0
        %v1374 = vadd.f32 %v1372, %v1373
        %v1375 = vsel %vm1349, %v1256, 0.0
        %v1376 = vadd.f32 %v1374, %v1375
        %v1377 = vsel %vm1349, %v1261, 0.0
        %v1378 = vadd.f32 %v1376, %v1377
        %v1379 = vsel %vm1349, %v1266, 0.0
        %v1380 = vadd.f32 %v1378, %v1379
        %v1381 = vsel %vm1349, %v1271, 0.0
        %v1382 = vadd.f32 %v1380, %v1381
        %v1383 = vsel %vm1349, %v1276, 0.0
        %v1384 = vadd.f32 %v1382, %v1383
        %v1385 = vsel %vm1349, %v1281, 0.0
        %v1386 = vadd.f32 %v1384, %v1385
        %v1387 = vsel %vm1349, %v1286, 0.0
        %v1388 = vadd.f32 %v1386, %v1387
        %v1389 = vsel %vm1349, %v1291, 0.0
        %v1390 = vadd.f32 %v1388, %v1389
        %v1391 = vsel %vm1349, %v1296, 0.0
        %v1392 = vadd.f32 %v1390, %v1391
        %v1393 = vsel %vm1349, %v1301, 0.0
        %v1394 = vadd.f32 %v1392, %v1393
        %v1395 = vsel %vm1349, %v1306, 0.0
        %v1396 = vadd.f32 %v1394, %v1395
        %v1397 = vsel %vm1349, %v1311, 0.0
        %v1398 = vadd.f32 %v1396, %v1397
        %v1399 = vsel %vm1349, %v1316, 0.0
        %v1400 = vadd.f32 %v1398, %v1399
        %v1401 = vsel %vm1349, %v1321, 0.0
        %v1402 = vadd.f32 %v1400, %v1401
        %v1403 = vsel %vm1349, %v1326, 0.0
        %v1404 = vadd.f32 %v1402, %v1403
        %v1405 = vsel %vm1349, %v1331, 0.0
        %v1406 = vadd.f32 %v1404, %v1405
        %v1407 = vsel %vm1349, %v1336, 0.0
        %v1408 = vadd.f32 %v1406, %v1407
        %v1409 = vsel %vm1349, %v1341, 0.0
        %v1410 = vadd.f32 %v1408, %v1409
        %v1411 = vsel %vm1349, %v1346, 0.0
        %v1412 = vadd.f32 %v1410, %v1411
        %v1413 = vrot.slane %v1412, 4
        %v1414 = vadd.f32 %v1412, %v1413
        %v1415 = vrot.slane %v1414, 2
        %v1416 = vadd.f32 %v1414, %v1415
        %v1417 = vrot.slane %v1416, 1
        %v1418 = vadd.f32 %v1416, %v1417
        %vm1419 = vcmask 253952
        %1420 = vst.msk [vmem:[%s437] sm:$0x1] %vm1419, %v1418
        %v1421 = vmul.f32 %v1191, %v1191
        %v1422 = vmul.f32 %v1196, %v1196
        %v1423 = vmul.f32 %v1201, %v1201
        %v1424 = vmul.f32 %v1206, %v1206
        %v1425 = vmul.f32 %v1211, %v1211
        %v1426 = vmul.f32 %v1216, %v1216
        %v1427 = vmul.f32 %v1221, %v1221
        %v1428 = vmul.f32 %v1226, %v1226
        %v1429 = vmul.f32 %v1231, %v1231
        %v1430 = vmul.f32 %v1236, %v1236
        %v1431 = vmul.f32 %v1241, %v1241
        %v1432 = vmul.f32 %v1246, %v1246
        %v1433 = vmul.f32 %v1251, %v1251
        %v1434 = vmul.f32 %v1256, %v1256
        %v1435 = vmul.f32 %v1261, %v1261
        %v1436 = vmul.f32 %v1266, %v1266
        %v1437 = vmul.f32 %v1271, %v1271
        %v1438 = vmul.f32 %v1276, %v1276
        %v1439 = vmul.f32 %v1281, %v1281
        %v1440 = vmul.f32 %v1286, %v1286
        %v1441 = vmul.f32 %v1291, %v1291
        %v1442 = vmul.f32 %v1296, %v1296
        %v1443 = vmul.f32 %v1301, %v1301
        %v1444 = vmul.f32 %v1306, %v1306
        %v1445 = vmul.f32 %v1311, %v1311
        %v1446 = vmul.f32 %v1316, %v1316
        %v1447 = vmul.f32 %v1321, %v1321
        %v1448 = vmul.f32 %v1326, %v1326
        %v1449 = vmul.f32 %v1331, %v1331
        %v1450 = vmul.f32 %v1336, %v1336
        %v1451 = vmul.f32 %v1341, %v1341
        %v1452 = vmul.f32 %v1346, %v1346
        %v1453 = vsel %vm1349, %v1421, 0.0
        %v1454 = vsel %vm1349, %v1422, 0.0
        %v1455 = vadd.f32 %v1453, %v1454
        %v1456 = vsel %vm1349, %v1423, 0.0
        %v1457 = vadd.f32 %v1455, %v1456
        %v1458 = vsel %vm1349, %v1424, 0.0
        %v1459 = vadd.f32 %v1457, %v1458
        %v1460 = vsel %vm1349, %v1425, 0.0
        %v1461 = vadd.f32 %v1459, %v1460
        %v1462 = vsel %vm1349, %v1426, 0.0
        %v1463 = vadd.f32 %v1461, %v1462
        %v1464 = vsel %vm1349, %v1427, 0.0
        %v1465 = vadd.f32 %v1463, %v1464
        %v1466 = vsel %vm1349, %v1428, 0.0
        %v1467 = vadd.f32 %v1465, %v1466
        %v1468 = vsel %vm1349, %v1429, 0.0
        %v1469 = vadd.f32 %v1467, %v1468
        %v1470 = vsel %vm1349, %v1430, 0.0
        %v1471 = vadd.f32 %v1469, %v1470
        %v1472 = vsel %vm1349, %v1431, 0.0
        %v1473 = vadd.f32 %v1471, %v1472
        %v1474 = vsel %vm1349, %v1432, 0.0
        %v1475 = vadd.f32 %v1473, %v1474
        %v1476 = vsel %vm1349, %v1433, 0.0
        %v1477 = vadd.f32 %v1475, %v1476
        %v1478 = vsel %vm1349, %v1434, 0.0
        %v1479 = vadd.f32 %v1477, %v1478
        %v1480 = vsel %vm1349, %v1435, 0.0
        %v1481 = vadd.f32 %v1479, %v1480
        %v1482 = vsel %vm1349, %v1436, 0.0
        %v1483 = vadd.f32 %v1481, %v1482
        %v1484 = vsel %vm1349, %v1437, 0.0
        %v1485 = vadd.f32 %v1483, %v1484
        %v1486 = vsel %vm1349, %v1438, 0.0
        %v1487 = vadd.f32 %v1485, %v1486
        %v1488 = vsel %vm1349, %v1439, 0.0
        %v1489 = vadd.f32 %v1487, %v1488
        %v1490 = vsel %vm1349, %v1440, 0.0
        %v1491 = vadd.f32 %v1489, %v1490
        %v1492 = vsel %vm1349, %v1441, 0.0
        %v1493 = vadd.f32 %v1491, %v1492
        %v1494 = vsel %vm1349, %v1442, 0.0
        %v1495 = vadd.f32 %v1493, %v1494
        %v1496 = vsel %vm1349, %v1443, 0.0
        %v1497 = vadd.f32 %v1495, %v1496
        %v1498 = vsel %vm1349, %v1444, 0.0
        %v1499 = vadd.f32 %v1497, %v1498
        %v1500 = vsel %vm1349, %v1445, 0.0
        %v1501 = vadd.f32 %v1499, %v1500
        %v1502 = vsel %vm1349, %v1446, 0.0
        %v1503 = vadd.f32 %v1501, %v1502
        %v1504 = vsel %vm1349, %v1447, 0.0
        %v1505 = vadd.f32 %v1503, %v1504
        %v1506 = vsel %vm1349, %v1448, 0.0
        %v1507 = vadd.f32 %v1505, %v1506
        %v1508 = vsel %vm1349, %v1449, 0.0
        %v1509 = vadd.f32 %v1507, %v1508
        %v1510 = vsel %vm1349, %v1450, 0.0
        %v1511 = vadd.f32 %v1509, %v1510
        %v1512 = vsel %vm1349, %v1451, 0.0
        %v1513 = vadd.f32 %v1511, %v1512
        %v1514 = vsel %vm1349, %v1452, 0.0
        %v1515 = vadd.f32 %v1513, %v1514
        %v1516 = vrot.slane %v1515, 4
        %v1517 = vadd.f32 %v1515, %v1516
        %v1518 = vrot.slane %v1517, 2
        %v1519 = vadd.f32 %v1517, %v1518
        %v1520 = vrot.slane %v1519, 1
        %v1521 = vadd.f32 %v1519, %v1520
        %1522 = vst.msk [vmem:[%s443] sm:$0x1] %vm1419, %v1521
        %s1523 = sand.u32 %s111, 1
        %s1524 = scalar_lea.sflag [#allocation5], %s1523
        %s1525 = sand.u32 %s111, 1
        %s1526 = scalar_lea.vmem [#allocation4], %s1525
        %s1527 = sand.u32 %s137, 1
        %s1528 = scalar_lea.sflag [#allocation7], %s1527
        %s1529 = sand.u32 %s137, 1
        %s1530 = scalar_lea.vmem [#allocation6], %s1529
        // Predicated region
        $region109: #{tpu_custom_call.1} parent=99 // pred_check
          %p1531 = pneg %p121
        $region110: #{tpu_custom_call.1} parent=99 // pred_check_branch
          %1533 = sbr.rel (%p1531) target = $region112
        $region111: #{tpu_custom_call.1} parent=99 // pred_region
          %s1535 = ssub.s32 16, 16
          %1536 = vsyncadd %s1524, %s1535
          %s1537 = smul.addr %s22, 16
          %s1538 = scalar_lea.hbm %s3, %s1537
          %s1540 = sshll.u32 %s1526, 4
          %s1541 = int_to_ptr.vmem [resolvable:$true] %s1540
          %1543 = dma.vmem_to_hbm [thread:$0]  %s1541, 16, %s1538, %s1524
        $region112: #{tpu_custom_call.1} parent=99 // pred_fallthru
          _
        // Predicated region
        $region113: #{tpu_custom_call.1} parent=99 // pred_check
          %p1544 = pneg %p147
        $region114: #{tpu_custom_call.1} parent=99 // pred_check_branch
          %1546 = sbr.rel (%p1544) target = $region116
        $region115: #{tpu_custom_call.1} parent=99 // pred_region
          %s1548 = ssub.s32 16, 16
          %1549 = vsyncadd %s1528, %s1548
          %s1550 = smul.addr %s22, 16
          %s1551 = scalar_lea.hbm %s4, %s1550
          %s1553 = sshll.u32 %s1530, 4
          %s1554 = int_to_ptr.vmem [resolvable:$true] %s1553
          %1556 = dma.vmem_to_hbm [thread:$0]  %s1554, 16, %s1551, %s1528
        $region116: #{tpu_custom_call.1} parent=99 // pred_fallthru
          _
      $region100: #{tpu_custom_call.1} parent=5 // pred_fallthru
        _
      %p1557 = scmp.le.s32.totalorder 2, %s17
      // Predicated region
      $region117: #{tpu_custom_call.1} parent=5 // pred_check
        %p1558 = pneg %p1557
      $region118: #{tpu_custom_call.1} parent=5 // pred_check_branch
        %1560 = sbr.rel (%p1558) target = $region120
      $region119: #{tpu_custom_call.1} parent=5 // pred_region
        %s1561 = ssub.s32 %s17, 2
        // Predicated region
        $region121: #{tpu_custom_call.1} parent=119 // pred_check
          %p1562 = pneg %p127
        $region122: #{tpu_custom_call.1} parent=119 // pred_check_branch
          %1564 = sbr.rel (%p1562) target = $region124
        $region123: #{tpu_custom_call.1} parent=119 // pred_region
          %s1565 = sand.u32 %s112, 1
          %s1566 = scalar_lea.sflag [#allocation5], %s1565
          %s1567 = sand.u32 %s112, 1
          %s1568 = scalar_lea.vmem [#allocation4], %s1567
          %1569 = dma.done %s1566, 16
        $region124: #{tpu_custom_call.1} parent=119 // pred_fallthru
          _
        // Predicated region
        $region125: #{tpu_custom_call.1} parent=119 // pred_check
          %p1570 = pneg %p153
        $region126: #{tpu_custom_call.1} parent=119 // pred_check_branch
          %1572 = sbr.rel (%p1570) target = $region128
        $region127: #{tpu_custom_call.1} parent=119 // pred_region
          %s1573 = sand.u32 %s138, 1
          %s1574 = scalar_lea.sflag [#allocation7], %s1573
          %s1575 = sand.u32 %s138, 1
          %s1576 = scalar_lea.vmem [#allocation6], %s1575
          %1577 = dma.done %s1574, 16
        $region128: #{tpu_custom_call.1} parent=119 // pred_fallthru
          _
      $region120: #{tpu_custom_call.1} parent=5 // pred_fallthru
        _
    $region6: #{tpu_custom_call.1} parent=1 // loop_footer
      %s21 = sadd.s32 1, %s17
    $region7: #{tpu_custom_call.1} parent=1 // loop_footer_branch
      %16 = sbr.rel target = $region3
    $region8: #{tpu_custom_call.1} parent=1 // loop_exit
      _
    %1578 = vsyncpa [#allocation5], 1
    %s1579 = scalar_lea.sflag [#allocation5], 1
    %1580 = vsyncpa %s1579, 1
    %1581 = vsyncpa [#allocation7], 1
    %s1582 = scalar_lea.sflag [#allocation7], 1
    %1583 = vsyncpa %s1582, 1

</llo_original>
